<compile_context>
chip_gen: v5e
topology: v5e:2x2
jax: 0.10.0
libtpu: 0.0.40
codegen_flags: <defaults>
</compile_context>

<pallas_src>
import functools

import jax
import jax.numpy as jnp
from jax.experimental import pallas as pl
from jax.experimental.pallas import tpu as pltpu


# ----------------------------- Pallas kernel -------------------------------
def _encoder_gru_kernel(x_ref, *refs, layer_num, hidden, seq_len, matmul_dtype):
    """Fused multi-layer GRU over the full sequence (single invocation).

    refs layout: for each layer l: w_x_l (Din,4H), w_h_l (H,4H), b_l (1,4H)
                 then o_ref (T,B,H), h_ref (L,B,H).
    Gate-column layout of the 4H axis: [ r | z | i_n | h_n ].
    """
    w_x_refs = [refs[3 * l + 0] for l in range(layer_num)]
    w_h_refs = [refs[3 * l + 1] for l in range(layer_num)]
    b_refs = [refs[3 * l + 2] for l in range(layer_num)]
    o_ref = refs[3 * layer_num]
    h_ref = refs[3 * layer_num + 1]

    H = hidden
    T = seq_len
    B = x_ref.shape[1]

    # Current layer's per-step inputs (kept in vregs; everything is unrolled).
    layer_in = [x_ref[t].astype(jnp.float32) for t in range(T)]

    for layer in range(layer_num):
        # Hoisted out of the time loop: weight loads, casts, bias broadcast.
        w_x = w_x_refs[layer][...].astype(matmul_dtype)          # (Din, 4H)
        w_h = w_h_refs[layer][...].astype(matmul_dtype)          # (H,   4H)
        bias = jnp.broadcast_to(b_refs[layer][...], (B, 4 * H))  # (B,   4H)

        h = jnp.zeros((B, H), jnp.float32)
        outs = []
        for t in range(T):
            x_t = layer_in[t]
            # Fused-layout gates: both MXU results are 4H = 128 lanes wide.
            g = (jnp.dot(x_t.astype(matmul_dtype), w_x,
                         preferred_element_type=jnp.float32)
                 + jnp.dot(h.astype(matmul_dtype), w_h,
                           preferred_element_type=jnp.float32)
                 + bias)
            r = jax.nn.sigmoid(g[:, 0 * H:1 * H])
            z = jax.nn.sigmoid(g[:, 1 * H:2 * H])
            n = jnp.tanh(g[:, 2 * H:3 * H] + r * g[:, 3 * H:4 * H])
            h = (1.0 - z) * n + z * h
            outs.append(h)

        # Final hidden state of this layer: written exactly once.
        h_ref[layer] = h.astype(h_ref.dtype)
        layer_in = outs

    # Last layer's per-step outputs -> output block (single HBM write-back
    # happens once when the kernel finishes; block stays VMEM-resident here).
    for t in range(T):
        o_ref[t] = layer_in[t].astype(o_ref.dtype)


# ------------------------------- wrapper ------------------------------------
def encoder_gru_forward(x, fused_params, *, matmul_dtype=jnp.float32):
    """EncoderGRU.forward: returns (o, h) like PyTorch nn.GRU with h0 = zeros."""
    T, B, _ = x.shape
    L = len(fused_params)
    H = fused_params[0][1].shape[0]          # w_h: (H, 4H)

    flat_params = []
    for w_x, w_h, b in fused_params:
        flat_params += [w_x, w_h, b]
    n_in = 1 + 3 * L

    kernel = functools.partial(
        _encoder_gru_kernel,
        layer_num=L, hidden=H, seq_len=T, matmul_dtype=matmul_dtype)

    o, h = pl.pallas_call(
        kernel,
        out_shape=(jax.ShapeDtypeStruct((T, B, H), x.dtype),
                   jax.ShapeDtypeStruct((L, B, H), x.dtype)),
        in_specs=[pl.BlockSpec(memory_space=pltpu.MemorySpace.VMEM)] * n_in,
        out_specs=(pl.BlockSpec(memory_space=pltpu.MemorySpace.VMEM),
                   pl.BlockSpec(memory_space=pltpu.MemorySpace.VMEM)),
    )(x, *flat_params)
    return o, h


# --------------------------- parameter handling ------------------------------
def init_gru_params(key, x_dim, y_dim, layer_num):
    """Deterministic params mirroring nn.GRU shapes (gate order r,z,n).

    Stored transposed relative to PyTorch (so the math is x @ W):
      wi_l{k}: (in_k, 3*y_dim), wh_l{k}: (y_dim, 3*y_dim), biases: (3*y_dim,)
    """
    params = []
    bound = 1.0 / float(y_dim) ** 0.5
    for layer in range(layer_num):
        in_dim = x_dim if layer == 0 else y_dim
        key, k1, k2, k3, k4 = jax.random.split(key, 5)
        wi = jax.random.uniform(k1, (in_dim, 3 * y_dim), jnp.float32, -bound, bound)
        wh = jax.random.uniform(k2, (y_dim, 3 * y_dim), jnp.float32, -bound, bound)
        bi = jax.random.uniform(k3, (3 * y_dim,), jnp.float32, -bound, bound)
        bh = jax.random.uniform(k4, (3 * y_dim,), jnp.float32, -bound, bound)
        params.append((wi, wh, bi, bh))
    return params


def fuse_gru_params(params):
    """Repack (wi, wh, bi, bh) into the lane-aligned 4H kernel layout.

    Columns of the 4H axis: [ r | z | i_n | h_n ]
      w_x = [wi_r | wi_z | wi_n | 0   ]  (Din, 4H)
      w_h = [wh_r | wh_z | 0    | wh_n]  (H,   4H)
      b   = [bi_r+bh_r | bi_z+bh_z | bi_n | bh_n]  (1, 4H)
    """
    fused = []
    for wi, wh, bi, bh in params:
        din, three_h = wi.shape
        H = three_h // 3
        w_x = jnp.concatenate([wi, jnp.zeros((din, H), wi.dtype)], axis=1)
        w_h = jnp.concatenate(
            [wh[:, 0:2 * H], jnp.zeros((H, H), wh.dtype), wh[:, 2 * H:3 * H]],
            axis=1)
        b = jnp.concatenate(
            [bi[0:H] + bh[0:H],
             bi[H:2 * H] + bh[H:2 * H],
             bi[2 * H:3 * H],
             bh[2 * H:3 * H]]).reshape(1, 4 * H)
        fused.append((w_x, w_h, b))
    return fused


# ---------------- pure-JAX reference (for validation only) ----------------
def _gru_layer_ref(x, wi, wh, bi, bh):
    T, B, _ = x.shape
    H = wh.shape[0]
    h = jnp.zeros((B, H), jnp.float32)
    outs = []
    for t in range(T):
        gi = x[t] @ wi + bi
        gh = h @ wh + bh
        r = jax.nn.sigmoid(gi[:, :H] + gh[:, :H])
        z = jax.nn.sigmoid(gi[:, H:2 * H] + gh[:, H:2 * H])
        n = jnp.tanh(gi[:, 2 * H:] + r * gh[:, 2 * H:])
        h = (1.0 - z) * n + z * h
        outs.append(h)
    return jnp.stack(outs, axis=0), h


def _encoder_gru_ref(x, params):
    h_finals = []
    layer_in = x
    for (wi, wh, bi, bh) in params:
        o, hT = _gru_layer_ref(layer_in, wi, wh, bi, bh)
        h_finals.append(hT)
        layer_in = o
    return layer_in, jnp.stack(h_finals, axis=0)


if __name__ == "__main__":
    # Small shapes implied by the module: seq=8, batch=2, x_dim=16, y_dim=32, 2 layers.
    SEQ, BATCH, X_DIM, Y_DIM, LAYERS = 8, 2, 16, 32, 2

    key = jax.random.PRNGKey(0)
    kx, kp = jax.random.split(key)
    x = jax.random.normal(kx, (SEQ, BATCH, X_DIM), jnp.float32)
    params = init_gru_params(kp, X_DIM, Y_DIM, LAYERS)
    fused_params = fuse_gru_params(params)

    o, h = encoder_gru_forward(x, fused_params)   # f32 MXU operands (strict check)
    o = jax.block_until_ready(o)
    h = jax.block_until_ready(h)

    assert o.shape == (SEQ, BATCH, Y_DIM)
    assert h.shape == (LAYERS, BATCH, Y_DIM)

    o_ref, h_ref = _encoder_gru_ref(x, params)
    assert jnp.allclose(o, o_ref, atol=2e-5, rtol=1e-5)
    assert jnp.allclose(h, h_ref, atol=2e-5, rtol=1e-5)

    print("KERNEL_OK")
</pallas_src>

<mosaic_0001>
module attributes {stable_mosaic.version = 11 : i64} {
  func.func @_encoder_gru_kernel(%arg0: memref<8x2x16xf32, #tpu.memory_space<vmem>>, %arg1: memref<16x128xf32, #tpu.memory_space<vmem>>, %arg2: memref<32x128xf32, #tpu.memory_space<vmem>>, %arg3: memref<1x128xf32, #tpu.memory_space<vmem>>, %arg4: memref<32x128xf32, #tpu.memory_space<vmem>>, %arg5: memref<32x128xf32, #tpu.memory_space<vmem>>, %arg6: memref<1x128xf32, #tpu.memory_space<vmem>>, %arg7: memref<8x2x32xf32, #tpu.memory_space<vmem>>, %arg8: memref<2x2x32xf32, #tpu.memory_space<vmem>>) attributes {dimension_semantics = [], scalar_prefetch = 0 : i64, scratch_operands = 0 : i64, tpu.core_type = #tpu.core_type<tc>} {
    %c0 = arith.constant 0 : index
    %c0_0 = arith.constant 0 : index
    %c0_1 = arith.constant 0 : index
    %0 = vector.load %arg0[%c0, %c0_0, %c0_1] : memref<8x2x16xf32, #tpu.memory_space<vmem>>, vector<1x2x16xf32>
    %1 = vector.shape_cast %0 : vector<1x2x16xf32> to vector<2x16xf32>
    %c1 = arith.constant 1 : index
    %c0_2 = arith.constant 0 : index
    %c0_3 = arith.constant 0 : index
    %2 = vector.load %arg0[%c1, %c0_2, %c0_3] : memref<8x2x16xf32, #tpu.memory_space<vmem>>, vector<1x2x16xf32>
    %3 = vector.shape_cast %2 : vector<1x2x16xf32> to vector<2x16xf32>
    %c2 = arith.constant 2 : index
    %c0_4 = arith.constant 0 : index
    %c0_5 = arith.constant 0 : index
    %4 = vector.load %arg0[%c2, %c0_4, %c0_5] : memref<8x2x16xf32, #tpu.memory_space<vmem>>, vector<1x2x16xf32>
    %5 = vector.shape_cast %4 : vector<1x2x16xf32> to vector<2x16xf32>
    %c3 = arith.constant 3 : index
    %c0_6 = arith.constant 0 : index
    %c0_7 = arith.constant 0 : index
    %6 = vector.load %arg0[%c3, %c0_6, %c0_7] : memref<8x2x16xf32, #tpu.memory_space<vmem>>, vector<1x2x16xf32>
    %7 = vector.shape_cast %6 : vector<1x2x16xf32> to vector<2x16xf32>
    %c4 = arith.constant 4 : index
    %c0_8 = arith.constant 0 : index
    %c0_9 = arith.constant 0 : index
    %8 = vector.load %arg0[%c4, %c0_8, %c0_9] : memref<8x2x16xf32, #tpu.memory_space<vmem>>, vector<1x2x16xf32>
    %9 = vector.shape_cast %8 : vector<1x2x16xf32> to vector<2x16xf32>
    %c5 = arith.constant 5 : index
    %c0_10 = arith.constant 0 : index
    %c0_11 = arith.constant 0 : index
    %10 = vector.load %arg0[%c5, %c0_10, %c0_11] : memref<8x2x16xf32, #tpu.memory_space<vmem>>, vector<1x2x16xf32>
    %11 = vector.shape_cast %10 : vector<1x2x16xf32> to vector<2x16xf32>
    %c6 = arith.constant 6 : index
    %c0_12 = arith.constant 0 : index
    %c0_13 = arith.constant 0 : index
    %12 = vector.load %arg0[%c6, %c0_12, %c0_13] : memref<8x2x16xf32, #tpu.memory_space<vmem>>, vector<1x2x16xf32>
    %13 = vector.shape_cast %12 : vector<1x2x16xf32> to vector<2x16xf32>
    %c7 = arith.constant 7 : index
    %c0_14 = arith.constant 0 : index
    %c0_15 = arith.constant 0 : index
    %14 = vector.load %arg0[%c7, %c0_14, %c0_15] : memref<8x2x16xf32, #tpu.memory_space<vmem>>, vector<1x2x16xf32>
    %15 = vector.shape_cast %14 : vector<1x2x16xf32> to vector<2x16xf32>
    %c0_16 = arith.constant 0 : index
    %c0_17 = arith.constant 0 : index
    %16 = vector.load %arg1[%c0_16, %c0_17] : memref<16x128xf32, #tpu.memory_space<vmem>>, vector<16x128xf32>
    %c0_18 = arith.constant 0 : index
    %c0_19 = arith.constant 0 : index
    %17 = vector.load %arg2[%c0_18, %c0_19] : memref<32x128xf32, #tpu.memory_space<vmem>>, vector<32x128xf32>
    %c0_20 = arith.constant 0 : index
    %c0_21 = arith.constant 0 : index
    %18 = vector.load %arg3[%c0_20, %c0_21] : memref<1x128xf32, #tpu.memory_space<vmem>>, vector<1x128xf32>
    %19 = vector.shape_cast %18 : vector<1x128xf32> to vector<1x128xf32>
    %20 = vector.broadcast %19 : vector<1x128xf32> to vector<2x128xf32>
    %cst = arith.constant 0.000000e+00 : f32
    %21 = vector.broadcast %cst : f32 to vector<2x32xf32>
    %cst_22 = arith.constant dense<0.000000e+00> : vector<2x128xf32>
    %22 = tpu.matmul %1, %16, %cst_22 {dimension_numbers = #tpu.dot_dimension_numbers<[1], [0], [0], [1], [0, 0, 1, 1], [], []>} : vector<2x16xf32>, vector<16x128xf32>, vector<2x128xf32> -> vector<2x128xf32>
    %cst_23 = arith.constant dense<0.000000e+00> : vector<2x128xf32>
    %23 = tpu.matmul %21, %17, %cst_23 {dimension_numbers = #tpu.dot_dimension_numbers<[1], [0], [0], [1], [0, 0, 1, 1], [], []>} : vector<2x32xf32>, vector<32x128xf32>, vector<2x128xf32> -> vector<2x128xf32>
    %24 = arith.addf %22, %23 : vector<2x128xf32>
    %25 = arith.addf %24, %20 : vector<2x128xf32>
    %26 = vector.extract_strided_slice %25 {offsets = [0, 0], sizes = [2, 32], strides = [1, 1]} : vector<2x128xf32> to vector<2x32xf32>
    %27 = arith.negf %26 : vector<2x32xf32>
    %28 = math.exp %27 : vector<2x32xf32>
    %cst_24 = arith.constant 1.000000e+00 : f32
    %29 = vector.broadcast %cst_24 : f32 to vector<2x32xf32>
    %30 = arith.addf %29, %28 : vector<2x32xf32>
    %31 = arith.divf %29, %30 : vector<2x32xf32>
    %32 = vector.extract_strided_slice %25 {offsets = [0, 32], sizes = [2, 32], strides = [1, 1]} : vector<2x128xf32> to vector<2x32xf32>
    %33 = arith.negf %32 : vector<2x32xf32>
    %34 = math.exp %33 : vector<2x32xf32>
    %cst_25 = arith.constant 1.000000e+00 : f32
    %35 = vector.broadcast %cst_25 : f32 to vector<2x32xf32>
    %36 = arith.addf %35, %34 : vector<2x32xf32>
    %37 = arith.divf %35, %36 : vector<2x32xf32>
    %38 = vector.extract_strided_slice %25 {offsets = [0, 64], sizes = [2, 32], strides = [1, 1]} : vector<2x128xf32> to vector<2x32xf32>
    %39 = vector.extract_strided_slice %25 {offsets = [0, 96], sizes = [2, 32], strides = [1, 1]} : vector<2x128xf32> to vector<2x32xf32>
    %40 = arith.mulf %31, %39 : vector<2x32xf32>
    %41 = arith.addf %38, %40 : vector<2x32xf32>
    %42 = math.tanh %41 : vector<2x32xf32>
    %cst_26 = arith.constant 1.000000e+00 : f32
    %43 = vector.broadcast %cst_26 : f32 to vector<2x32xf32>
    %44 = arith.subf %43, %37 : vector<2x32xf32>
    %45 = arith.mulf %44, %42 : vector<2x32xf32>
    %46 = arith.mulf %37, %21 : vector<2x32xf32>
    %47 = arith.addf %45, %46 : vector<2x32xf32>
    %cst_27 = arith.constant dense<0.000000e+00> : vector<2x128xf32>
    %48 = tpu.matmul %3, %16, %cst_27 {dimension_numbers = #tpu.dot_dimension_numbers<[1], [0], [0], [1], [0, 0, 1, 1], [], []>} : vector<2x16xf32>, vector<16x128xf32>, vector<2x128xf32> -> vector<2x128xf32>
    %cst_28 = arith.constant dense<0.000000e+00> : vector<2x128xf32>
    %49 = tpu.matmul %47, %17, %cst_28 {dimension_numbers = #tpu.dot_dimension_numbers<[1], [0], [0], [1], [0, 0, 1, 1], [], []>} : vector<2x32xf32>, vector<32x128xf32>, vector<2x128xf32> -> vector<2x128xf32>
    %50 = arith.addf %48, %49 : vector<2x128xf32>
    %51 = arith.addf %50, %20 : vector<2x128xf32>
    %52 = vector.extract_strided_slice %51 {offsets = [0, 0], sizes = [2, 32], strides = [1, 1]} : vector<2x128xf32> to vector<2x32xf32>
    %53 = arith.negf %52 : vector<2x32xf32>
    %54 = math.exp %53 : vector<2x32xf32>
    %cst_29 = arith.constant 1.000000e+00 : f32
    %55 = vector.broadcast %cst_29 : f32 to vector<2x32xf32>
    %56 = arith.addf %55, %54 : vector<2x32xf32>
    %57 = arith.divf %55, %56 : vector<2x32xf32>
    %58 = vector.extract_strided_slice %51 {offsets = [0, 32], sizes = [2, 32], strides = [1, 1]} : vector<2x128xf32> to vector<2x32xf32>
    %59 = arith.negf %58 : vector<2x32xf32>
    %60 = math.exp %59 : vector<2x32xf32>
    %cst_30 = arith.constant 1.000000e+00 : f32
    %61 = vector.broadcast %cst_30 : f32 to vector<2x32xf32>
    %62 = arith.addf %61, %60 : vector<2x32xf32>
    %63 = arith.divf %61, %62 : vector<2x32xf32>
    %64 = vector.extract_strided_slice %51 {offsets = [0, 64], sizes = [2, 32], strides = [1, 1]} : vector<2x128xf32> to vector<2x32xf32>
    %65 = vector.extract_strided_slice %51 {offsets = [0, 96], sizes = [2, 32], strides = [1, 1]} : vector<2x128xf32> to vector<2x32xf32>
    %66 = arith.mulf %57, %65 : vector<2x32xf32>
    %67 = arith.addf %64, %66 : vector<2x32xf32>
    %68 = math.tanh %67 : vector<2x32xf32>
    %cst_31 = arith.constant 1.000000e+00 : f32
    %69 = vector.broadcast %cst_31 : f32 to vector<2x32xf32>
    %70 = arith.subf %69, %63 : vector<2x32xf32>
    %71 = arith.mulf %70, %68 : vector<2x32xf32>
    %72 = arith.mulf %63, %47 : vector<2x32xf32>
    %73 = arith.addf %71, %72 : vector<2x32xf32>
    %cst_32 = arith.constant dense<0.000000e+00> : vector<2x128xf32>
    %74 = tpu.matmul %5, %16, %cst_32 {dimension_numbers = #tpu.dot_dimension_numbers<[1], [0], [0], [1], [0, 0, 1, 1], [], []>} : vector<2x16xf32>, vector<16x128xf32>, vector<2x128xf32> -> vector<2x128xf32>
    %cst_33 = arith.constant dense<0.000000e+00> : vector<2x128xf32>
    %75 = tpu.matmul %73, %17, %cst_33 {dimension_numbers = #tpu.dot_dimension_numbers<[1], [0], [0], [1], [0, 0, 1, 1], [], []>} : vector<2x32xf32>, vector<32x128xf32>, vector<2x128xf32> -> vector<2x128xf32>
    %76 = arith.addf %74, %75 : vector<2x128xf32>
    %77 = arith.addf %76, %20 : vector<2x128xf32>
    %78 = vector.extract_strided_slice %77 {offsets = [0, 0], sizes = [2, 32], strides = [1, 1]} : vector<2x128xf32> to vector<2x32xf32>
    %79 = arith.negf %78 : vector<2x32xf32>
    %80 = math.exp %79 : vector<2x32xf32>
    %cst_34 = arith.constant 1.000000e+00 : f32
    %81 = vector.broadcast %cst_34 : f32 to vector<2x32xf32>
    %82 = arith.addf %81, %80 : vector<2x32xf32>
    %83 = arith.divf %81, %82 : vector<2x32xf32>
    %84 = vector.extract_strided_slice %77 {offsets = [0, 32], sizes = [2, 32], strides = [1, 1]} : vector<2x128xf32> to vector<2x32xf32>
    %85 = arith.negf %84 : vector<2x32xf32>
    %86 = math.exp %85 : vector<2x32xf32>
    %cst_35 = arith.constant 1.000000e+00 : f32
    %87 = vector.broadcast %cst_35 : f32 to vector<2x32xf32>
    %88 = arith.addf %87, %86 : vector<2x32xf32>
    %89 = arith.divf %87, %88 : vector<2x32xf32>
    %90 = vector.extract_strided_slice %77 {offsets = [0, 64], sizes = [2, 32], strides = [1, 1]} : vector<2x128xf32> to vector<2x32xf32>
    %91 = vector.extract_strided_slice %77 {offsets = [0, 96], sizes = [2, 32], strides = [1, 1]} : vector<2x128xf32> to vector<2x32xf32>
    %92 = arith.mulf %83, %91 : vector<2x32xf32>
    %93 = arith.addf %90, %92 : vector<2x32xf32>
    %94 = math.tanh %93 : vector<2x32xf32>
    %cst_36 = arith.constant 1.000000e+00 : f32
    %95 = vector.broadcast %cst_36 : f32 to vector<2x32xf32>
    %96 = arith.subf %95, %89 : vector<2x32xf32>
    %97 = arith.mulf %96, %94 : vector<2x32xf32>
    %98 = arith.mulf %89, %73 : vector<2x32xf32>
    %99 = arith.addf %97, %98 : vector<2x32xf32>
    %cst_37 = arith.constant dense<0.000000e+00> : vector<2x128xf32>
    %100 = tpu.matmul %7, %16, %cst_37 {dimension_numbers = #tpu.dot_dimension_numbers<[1], [0], [0], [1], [0, 0, 1, 1], [], []>} : vector<2x16xf32>, vector<16x128xf32>, vector<2x128xf32> -> vector<2x128xf32>
    %cst_38 = arith.constant dense<0.000000e+00> : vector<2x128xf32>
    %101 = tpu.matmul %99, %17, %cst_38 {dimension_numbers = #tpu.dot_dimension_numbers<[1], [0], [0], [1], [0, 0, 1, 1], [], []>} : vector<2x32xf32>, vector<32x128xf32>, vector<2x128xf32> -> vector<2x128xf32>
    %102 = arith.addf %100, %101 : vector<2x128xf32>
    %103 = arith.addf %102, %20 : vector<2x128xf32>
    %104 = vector.extract_strided_slice %103 {offsets = [0, 0], sizes = [2, 32], strides = [1, 1]} : vector<2x128xf32> to vector<2x32xf32>
    %105 = arith.negf %104 : vector<2x32xf32>
    %106 = math.exp %105 : vector<2x32xf32>
    %cst_39 = arith.constant 1.000000e+00 : f32
    %107 = vector.broadcast %cst_39 : f32 to vector<2x32xf32>
    %108 = arith.addf %107, %106 : vector<2x32xf32>
    %109 = arith.divf %107, %108 : vector<2x32xf32>
    %110 = vector.extract_strided_slice %103 {offsets = [0, 32], sizes = [2, 32], strides = [1, 1]} : vector<2x128xf32> to vector<2x32xf32>
    %111 = arith.negf %110 : vector<2x32xf32>
    %112 = math.exp %111 : vector<2x32xf32>
    %cst_40 = arith.constant 1.000000e+00 : f32
    %113 = vector.broadcast %cst_40 : f32 to vector<2x32xf32>
    %114 = arith.addf %113, %112 : vector<2x32xf32>
    %115 = arith.divf %113, %114 : vector<2x32xf32>
    %116 = vector.extract_strided_slice %103 {offsets = [0, 64], sizes = [2, 32], strides = [1, 1]} : vector<2x128xf32> to vector<2x32xf32>
    %117 = vector.extract_strided_slice %103 {offsets = [0, 96], sizes = [2, 32], strides = [1, 1]} : vector<2x128xf32> to vector<2x32xf32>
    %118 = arith.mulf %109, %117 : vector<2x32xf32>
    %119 = arith.addf %116, %118 : vector<2x32xf32>
    %120 = math.tanh %119 : vector<2x32xf32>
    %cst_41 = arith.constant 1.000000e+00 : f32
    %121 = vector.broadcast %cst_41 : f32 to vector<2x32xf32>
    %122 = arith.subf %121, %115 : vector<2x32xf32>
    %123 = arith.mulf %122, %120 : vector<2x32xf32>
    %124 = arith.mulf %115, %99 : vector<2x32xf32>
    %125 = arith.addf %123, %124 : vector<2x32xf32>
    %cst_42 = arith.constant dense<0.000000e+00> : vector<2x128xf32>
    %126 = tpu.matmul %9, %16, %cst_42 {dimension_numbers = #tpu.dot_dimension_numbers<[1], [0], [0], [1], [0, 0, 1, 1], [], []>} : vector<2x16xf32>, vector<16x128xf32>, vector<2x128xf32> -> vector<2x128xf32>
    %cst_43 = arith.constant dense<0.000000e+00> : vector<2x128xf32>
    %127 = tpu.matmul %125, %17, %cst_43 {dimension_numbers = #tpu.dot_dimension_numbers<[1], [0], [0], [1], [0, 0, 1, 1], [], []>} : vector<2x32xf32>, vector<32x128xf32>, vector<2x128xf32> -> vector<2x128xf32>
    %128 = arith.addf %126, %127 : vector<2x128xf32>
    %129 = arith.addf %128, %20 : vector<2x128xf32>
    %130 = vector.extract_strided_slice %129 {offsets = [0, 0], sizes = [2, 32], strides = [1, 1]} : vector<2x128xf32> to vector<2x32xf32>
    %131 = arith.negf %130 : vector<2x32xf32>
    %132 = math.exp %131 : vector<2x32xf32>
    %cst_44 = arith.constant 1.000000e+00 : f32
    %133 = vector.broadcast %cst_44 : f32 to vector<2x32xf32>
    %134 = arith.addf %133, %132 : vector<2x32xf32>
    %135 = arith.divf %133, %134 : vector<2x32xf32>
    %136 = vector.extract_strided_slice %129 {offsets = [0, 32], sizes = [2, 32], strides = [1, 1]} : vector<2x128xf32> to vector<2x32xf32>
    %137 = arith.negf %136 : vector<2x32xf32>
    %138 = math.exp %137 : vector<2x32xf32>
    %cst_45 = arith.constant 1.000000e+00 : f32
    %139 = vector.broadcast %cst_45 : f32 to vector<2x32xf32>
    %140 = arith.addf %139, %138 : vector<2x32xf32>
    %141 = arith.divf %139, %140 : vector<2x32xf32>
    %142 = vector.extract_strided_slice %129 {offsets = [0, 64], sizes = [2, 32], strides = [1, 1]} : vector<2x128xf32> to vector<2x32xf32>
    %143 = vector.extract_strided_slice %129 {offsets = [0, 96], sizes = [2, 32], strides = [1, 1]} : vector<2x128xf32> to vector<2x32xf32>
    %144 = arith.mulf %135, %143 : vector<2x32xf32>
    %145 = arith.addf %142, %144 : vector<2x32xf32>
    %146 = math.tanh %145 : vector<2x32xf32>
    %cst_46 = arith.constant 1.000000e+00 : f32
    %147 = vector.broadcast %cst_46 : f32 to vector<2x32xf32>
    %148 = arith.subf %147, %141 : vector<2x32xf32>
    %149 = arith.mulf %148, %146 : vector<2x32xf32>
    %150 = arith.mulf %141, %125 : vector<2x32xf32>
    %151 = arith.addf %149, %150 : vector<2x32xf32>
    %cst_47 = arith.constant dense<0.000000e+00> : vector<2x128xf32>
    %152 = tpu.matmul %11, %16, %cst_47 {dimension_numbers = #tpu.dot_dimension_numbers<[1], [0], [0], [1], [0, 0, 1, 1], [], []>} : vector<2x16xf32>, vector<16x128xf32>, vector<2x128xf32> -> vector<2x128xf32>
    %cst_48 = arith.constant dense<0.000000e+00> : vector<2x128xf32>
    %153 = tpu.matmul %151, %17, %cst_48 {dimension_numbers = #tpu.dot_dimension_numbers<[1], [0], [0], [1], [0, 0, 1, 1], [], []>} : vector<2x32xf32>, vector<32x128xf32>, vector<2x128xf32> -> vector<2x128xf32>
    %154 = arith.addf %152, %153 : vector<2x128xf32>
    %155 = arith.addf %154, %20 : vector<2x128xf32>
    %156 = vector.extract_strided_slice %155 {offsets = [0, 0], sizes = [2, 32], strides = [1, 1]} : vector<2x128xf32> to vector<2x32xf32>
    %157 = arith.negf %156 : vector<2x32xf32>
    %158 = math.exp %157 : vector<2x32xf32>
    %cst_49 = arith.constant 1.000000e+00 : f32
    %159 = vector.broadcast %cst_49 : f32 to vector<2x32xf32>
    %160 = arith.addf %159, %158 : vector<2x32xf32>
    %161 = arith.divf %159, %160 : vector<2x32xf32>
    %162 = vector.extract_strided_slice %155 {offsets = [0, 32], sizes = [2, 32], strides = [1, 1]} : vector<2x128xf32> to vector<2x32xf32>
    %163 = arith.negf %162 : vector<2x32xf32>
    %164 = math.exp %163 : vector<2x32xf32>
    %cst_50 = arith.constant 1.000000e+00 : f32
    %165 = vector.broadcast %cst_50 : f32 to vector<2x32xf32>
    %166 = arith.addf %165, %164 : vector<2x32xf32>
    %167 = arith.divf %165, %166 : vector<2x32xf32>
    %168 = vector.extract_strided_slice %155 {offsets = [0, 64], sizes = [2, 32], strides = [1, 1]} : vector<2x128xf32> to vector<2x32xf32>
    %169 = vector.extract_strided_slice %155 {offsets = [0, 96], sizes = [2, 32], strides = [1, 1]} : vector<2x128xf32> to vector<2x32xf32>
    %170 = arith.mulf %161, %169 : vector<2x32xf32>
    %171 = arith.addf %168, %170 : vector<2x32xf32>
    %172 = math.tanh %171 : vector<2x32xf32>
    %cst_51 = arith.constant 1.000000e+00 : f32
    %173 = vector.broadcast %cst_51 : f32 to vector<2x32xf32>
    %174 = arith.subf %173, %167 : vector<2x32xf32>
    %175 = arith.mulf %174, %172 : vector<2x32xf32>
    %176 = arith.mulf %167, %151 : vector<2x32xf32>
    %177 = arith.addf %175, %176 : vector<2x32xf32>
    %cst_52 = arith.constant dense<0.000000e+00> : vector<2x128xf32>
    %178 = tpu.matmul %13, %16, %cst_52 {dimension_numbers = #tpu.dot_dimension_numbers<[1], [0], [0], [1], [0, 0, 1, 1], [], []>} : vector<2x16xf32>, vector<16x128xf32>, vector<2x128xf32> -> vector<2x128xf32>
    %cst_53 = arith.constant dense<0.000000e+00> : vector<2x128xf32>
    %179 = tpu.matmul %177, %17, %cst_53 {dimension_numbers = #tpu.dot_dimension_numbers<[1], [0], [0], [1], [0, 0, 1, 1], [], []>} : vector<2x32xf32>, vector<32x128xf32>, vector<2x128xf32> -> vector<2x128xf32>
    %180 = arith.addf %178, %179 : vector<2x128xf32>
    %181 = arith.addf %180, %20 : vector<2x128xf32>
    %182 = vector.extract_strided_slice %181 {offsets = [0, 0], sizes = [2, 32], strides = [1, 1]} : vector<2x128xf32> to vector<2x32xf32>
    %183 = arith.negf %182 : vector<2x32xf32>
    %184 = math.exp %183 : vector<2x32xf32>
    %cst_54 = arith.constant 1.000000e+00 : f32
    %185 = vector.broadcast %cst_54 : f32 to vector<2x32xf32>
    %186 = arith.addf %185, %184 : vector<2x32xf32>
    %187 = arith.divf %185, %186 : vector<2x32xf32>
    %188 = vector.extract_strided_slice %181 {offsets = [0, 32], sizes = [2, 32], strides = [1, 1]} : vector<2x128xf32> to vector<2x32xf32>
    %189 = arith.negf %188 : vector<2x32xf32>
    %190 = math.exp %189 : vector<2x32xf32>
    %cst_55 = arith.constant 1.000000e+00 : f32
    %191 = vector.broadcast %cst_55 : f32 to vector<2x32xf32>
    %192 = arith.addf %191, %190 : vector<2x32xf32>
    %193 = arith.divf %191, %192 : vector<2x32xf32>
    %194 = vector.extract_strided_slice %181 {offsets = [0, 64], sizes = [2, 32], strides = [1, 1]} : vector<2x128xf32> to vector<2x32xf32>
    %195 = vector.extract_strided_slice %181 {offsets = [0, 96], sizes = [2, 32], strides = [1, 1]} : vector<2x128xf32> to vector<2x32xf32>
    %196 = arith.mulf %187, %195 : vector<2x32xf32>
    %197 = arith.addf %194, %196 : vector<2x32xf32>
    %198 = math.tanh %197 : vector<2x32xf32>
    %cst_56 = arith.constant 1.000000e+00 : f32
    %199 = vector.broadcast %cst_56 : f32 to vector<2x32xf32>
    %200 = arith.subf %199, %193 : vector<2x32xf32>
    %201 = arith.mulf %200, %198 : vector<2x32xf32>
    %202 = arith.mulf %193, %177 : vector<2x32xf32>
    %203 = arith.addf %201, %202 : vector<2x32xf32>
    %cst_57 = arith.constant dense<0.000000e+00> : vector<2x128xf32>
    %204 = tpu.matmul %15, %16, %cst_57 {dimension_numbers = #tpu.dot_dimension_numbers<[1], [0], [0], [1], [0, 0, 1, 1], [], []>} : vector<2x16xf32>, vector<16x128xf32>, vector<2x128xf32> -> vector<2x128xf32>
    %cst_58 = arith.constant dense<0.000000e+00> : vector<2x128xf32>
    %205 = tpu.matmul %203, %17, %cst_58 {dimension_numbers = #tpu.dot_dimension_numbers<[1], [0], [0], [1], [0, 0, 1, 1], [], []>} : vector<2x32xf32>, vector<32x128xf32>, vector<2x128xf32> -> vector<2x128xf32>
    %206 = arith.addf %204, %205 : vector<2x128xf32>
    %207 = arith.addf %206, %20 : vector<2x128xf32>
    %208 = vector.extract_strided_slice %207 {offsets = [0, 0], sizes = [2, 32], strides = [1, 1]} : vector<2x128xf32> to vector<2x32xf32>
    %209 = arith.negf %208 : vector<2x32xf32>
    %210 = math.exp %209 : vector<2x32xf32>
    %cst_59 = arith.constant 1.000000e+00 : f32
    %211 = vector.broadcast %cst_59 : f32 to vector<2x32xf32>
    %212 = arith.addf %211, %210 : vector<2x32xf32>
    %213 = arith.divf %211, %212 : vector<2x32xf32>
    %214 = vector.extract_strided_slice %207 {offsets = [0, 32], sizes = [2, 32], strides = [1, 1]} : vector<2x128xf32> to vector<2x32xf32>
    %215 = arith.negf %214 : vector<2x32xf32>
    %216 = math.exp %215 : vector<2x32xf32>
    %cst_60 = arith.constant 1.000000e+00 : f32
    %217 = vector.broadcast %cst_60 : f32 to vector<2x32xf32>
    %218 = arith.addf %217, %216 : vector<2x32xf32>
    %219 = arith.divf %217, %218 : vector<2x32xf32>
    %220 = vector.extract_strided_slice %207 {offsets = [0, 64], sizes = [2, 32], strides = [1, 1]} : vector<2x128xf32> to vector<2x32xf32>
    %221 = vector.extract_strided_slice %207 {offsets = [0, 96], sizes = [2, 32], strides = [1, 1]} : vector<2x128xf32> to vector<2x32xf32>
    %222 = arith.mulf %213, %221 : vector<2x32xf32>
    %223 = arith.addf %220, %222 : vector<2x32xf32>
    %224 = math.tanh %223 : vector<2x32xf32>
    %cst_61 = arith.constant 1.000000e+00 : f32
    %225 = vector.broadcast %cst_61 : f32 to vector<2x32xf32>
    %226 = arith.subf %225, %219 : vector<2x32xf32>
    %227 = arith.mulf %226, %224 : vector<2x32xf32>
    %228 = arith.mulf %219, %203 : vector<2x32xf32>
    %229 = arith.addf %227, %228 : vector<2x32xf32>
    %c0_62 = arith.constant 0 : index
    %c0_63 = arith.constant 0 : index
    %c0_64 = arith.constant 0 : index
    %230 = vector.load %arg8[%c0_62, %c0_63, %c0_64] : memref<2x2x32xf32, #tpu.memory_space<vmem>>, vector<1x2x32xf32>
    %231 = vector.shape_cast %230 : vector<1x2x32xf32> to vector<2x32xf32>
    %232 = vector.shape_cast %229 : vector<2x32xf32> to vector<1x2x32xf32>
    tpu.vector_store %arg8[%c0_62, %c0_63, %c0_64], %232 {strides = array<i32>} : memref<2x2x32xf32, #tpu.memory_space<vmem>>, vector<1x2x32xf32>,
    %c0_65 = arith.constant 0 : index
    %c0_66 = arith.constant 0 : index
    %233 = vector.load %arg4[%c0_65, %c0_66] : memref<32x128xf32, #tpu.memory_space<vmem>>, vector<32x128xf32>
    %c0_67 = arith.constant 0 : index
    %c0_68 = arith.constant 0 : index
    %234 = vector.load %arg5[%c0_67, %c0_68] : memref<32x128xf32, #tpu.memory_space<vmem>>, vector<32x128xf32>
    %c0_69 = arith.constant 0 : index
    %c0_70 = arith.constant 0 : index
    %235 = vector.load %arg6[%c0_69, %c0_70] : memref<1x128xf32, #tpu.memory_space<vmem>>, vector<1x128xf32>
    %236 = vector.shape_cast %235 : vector<1x128xf32> to vector<1x128xf32>
    %237 = vector.broadcast %236 : vector<1x128xf32> to vector<2x128xf32>
    %cst_71 = arith.constant 0.000000e+00 : f32
    %238 = vector.broadcast %cst_71 : f32 to vector<2x32xf32>
    %cst_72 = arith.constant dense<0.000000e+00> : vector<2x128xf32>
    %239 = tpu.matmul %47, %233, %cst_72 {dimension_numbers = #tpu.dot_dimension_numbers<[1], [0], [0], [1], [0, 0, 1, 1], [], []>} : vector<2x32xf32>, vector<32x128xf32>, vector<2x128xf32> -> vector<2x128xf32>
    %cst_73 = arith.constant dense<0.000000e+00> : vector<2x128xf32>
    %240 = tpu.matmul %238, %234, %cst_73 {dimension_numbers = #tpu.dot_dimension_numbers<[1], [0], [0], [1], [0, 0, 1, 1], [], []>} : vector<2x32xf32>, vector<32x128xf32>, vector<2x128xf32> -> vector<2x128xf32>
    %241 = arith.addf %239, %240 : vector<2x128xf32>
    %242 = arith.addf %241, %237 : vector<2x128xf32>
    %243 = vector.extract_strided_slice %242 {offsets = [0, 0], sizes = [2, 32], strides = [1, 1]} : vector<2x128xf32> to vector<2x32xf32>
    %244 = arith.negf %243 : vector<2x32xf32>
    %245 = math.exp %244 : vector<2x32xf32>
    %cst_74 = arith.constant 1.000000e+00 : f32
    %246 = vector.broadcast %cst_74 : f32 to vector<2x32xf32>
    %247 = arith.addf %246, %245 : vector<2x32xf32>
    %248 = arith.divf %246, %247 : vector<2x32xf32>
    %249 = vector.extract_strided_slice %242 {offsets = [0, 32], sizes = [2, 32], strides = [1, 1]} : vector<2x128xf32> to vector<2x32xf32>
    %250 = arith.negf %249 : vector<2x32xf32>
    %251 = math.exp %250 : vector<2x32xf32>
    %cst_75 = arith.constant 1.000000e+00 : f32
    %252 = vector.broadcast %cst_75 : f32 to vector<2x32xf32>
    %253 = arith.addf %252, %251 : vector<2x32xf32>
    %254 = arith.divf %252, %253 : vector<2x32xf32>
    %255 = vector.extract_strided_slice %242 {offsets = [0, 64], sizes = [2, 32], strides = [1, 1]} : vector<2x128xf32> to vector<2x32xf32>
    %256 = vector.extract_strided_slice %242 {offsets = [0, 96], sizes = [2, 32], strides = [1, 1]} : vector<2x128xf32> to vector<2x32xf32>
    %257 = arith.mulf %248, %256 : vector<2x32xf32>
    %258 = arith.addf %255, %257 : vector<2x32xf32>
    %259 = math.tanh %258 : vector<2x32xf32>
    %cst_76 = arith.constant 1.000000e+00 : f32
    %260 = vector.broadcast %cst_76 : f32 to vector<2x32xf32>
    %261 = arith.subf %260, %254 : vector<2x32xf32>
    %262 = arith.mulf %261, %259 : vector<2x32xf32>
    %263 = arith.mulf %254, %238 : vector<2x32xf32>
    %264 = arith.addf %262, %263 : vector<2x32xf32>
    %cst_77 = arith.constant dense<0.000000e+00> : vector<2x128xf32>
    %265 = tpu.matmul %73, %233, %cst_77 {dimension_numbers = #tpu.dot_dimension_numbers<[1], [0], [0], [1], [0, 0, 1, 1], [], []>} : vector<2x32xf32>, vector<32x128xf32>, vector<2x128xf32> -> vector<2x128xf32>
    %cst_78 = arith.constant dense<0.000000e+00> : vector<2x128xf32>
    %266 = tpu.matmul %264, %234, %cst_78 {dimension_numbers = #tpu.dot_dimension_numbers<[1], [0], [0], [1], [0, 0, 1, 1], [], []>} : vector<2x32xf32>, vector<32x128xf32>, vector<2x128xf32> -> vector<2x128xf32>
    %267 = arith.addf %265, %266 : vector<2x128xf32>
    %268 = arith.addf %267, %237 : vector<2x128xf32>
    %269 = vector.extract_strided_slice %268 {offsets = [0, 0], sizes = [2, 32], strides = [1, 1]} : vector<2x128xf32> to vector<2x32xf32>
    %270 = arith.negf %269 : vector<2x32xf32>
    %271 = math.exp %270 : vector<2x32xf32>
    %cst_79 = arith.constant 1.000000e+00 : f32
    %272 = vector.broadcast %cst_79 : f32 to vector<2x32xf32>
    %273 = arith.addf %272, %271 : vector<2x32xf32>
    %274 = arith.divf %272, %273 : vector<2x32xf32>
    %275 = vector.extract_strided_slice %268 {offsets = [0, 32], sizes = [2, 32], strides = [1, 1]} : vector<2x128xf32> to vector<2x32xf32>
    %276 = arith.negf %275 : vector<2x32xf32>
    %277 = math.exp %276 : vector<2x32xf32>
    %cst_80 = arith.constant 1.000000e+00 : f32
    %278 = vector.broadcast %cst_80 : f32 to vector<2x32xf32>
    %279 = arith.addf %278, %277 : vector<2x32xf32>
    %280 = arith.divf %278, %279 : vector<2x32xf32>
    %281 = vector.extract_strided_slice %268 {offsets = [0, 64], sizes = [2, 32], strides = [1, 1]} : vector<2x128xf32> to vector<2x32xf32>
    %282 = vector.extract_strided_slice %268 {offsets = [0, 96], sizes = [2, 32], strides = [1, 1]} : vector<2x128xf32> to vector<2x32xf32>
    %283 = arith.mulf %274, %282 : vector<2x32xf32>
    %284 = arith.addf %281, %283 : vector<2x32xf32>
    %285 = math.tanh %284 : vector<2x32xf32>
    %cst_81 = arith.constant 1.000000e+00 : f32
    %286 = vector.broadcast %cst_81 : f32 to vector<2x32xf32>
    %287 = arith.subf %286, %280 : vector<2x32xf32>
    %288 = arith.mulf %287, %285 : vector<2x32xf32>
    %289 = arith.mulf %280, %264 : vector<2x32xf32>
    %290 = arith.addf %288, %289 : vector<2x32xf32>
    %cst_82 = arith.constant dense<0.000000e+00> : vector<2x128xf32>
    %291 = tpu.matmul %99, %233, %cst_82 {dimension_numbers = #tpu.dot_dimension_numbers<[1], [0], [0], [1], [0, 0, 1, 1], [], []>} : vector<2x32xf32>, vector<32x128xf32>, vector<2x128xf32> -> vector<2x128xf32>
    %cst_83 = arith.constant dense<0.000000e+00> : vector<2x128xf32>
    %292 = tpu.matmul %290, %234, %cst_83 {dimension_numbers = #tpu.dot_dimension_numbers<[1], [0], [0], [1], [0, 0, 1, 1], [], []>} : vector<2x32xf32>, vector<32x128xf32>, vector<2x128xf32> -> vector<2x128xf32>
    %293 = arith.addf %291, %292 : vector<2x128xf32>
    %294 = arith.addf %293, %237 : vector<2x128xf32>
    %295 = vector.extract_strided_slice %294 {offsets = [0, 0], sizes = [2, 32], strides = [1, 1]} : vector<2x128xf32> to vector<2x32xf32>
    %296 = arith.negf %295 : vector<2x32xf32>
    %297 = math.exp %296 : vector<2x32xf32>
    %cst_84 = arith.constant 1.000000e+00 : f32
    %298 = vector.broadcast %cst_84 : f32 to vector<2x32xf32>
    %299 = arith.addf %298, %297 : vector<2x32xf32>
    %300 = arith.divf %298, %299 : vector<2x32xf32>
    %301 = vector.extract_strided_slice %294 {offsets = [0, 32], sizes = [2, 32], strides = [1, 1]} : vector<2x128xf32> to vector<2x32xf32>
    %302 = arith.negf %301 : vector<2x32xf32>
    %303 = math.exp %302 : vector<2x32xf32>
    %cst_85 = arith.constant 1.000000e+00 : f32
    %304 = vector.broadcast %cst_85 : f32 to vector<2x32xf32>
    %305 = arith.addf %304, %303 : vector<2x32xf32>
    %306 = arith.divf %304, %305 : vector<2x32xf32>
    %307 = vector.extract_strided_slice %294 {offsets = [0, 64], sizes = [2, 32], strides = [1, 1]} : vector<2x128xf32> to vector<2x32xf32>
    %308 = vector.extract_strided_slice %294 {offsets = [0, 96], sizes = [2, 32], strides = [1, 1]} : vector<2x128xf32> to vector<2x32xf32>
    %309 = arith.mulf %300, %308 : vector<2x32xf32>
    %310 = arith.addf %307, %309 : vector<2x32xf32>
    %311 = math.tanh %310 : vector<2x32xf32>
    %cst_86 = arith.constant 1.000000e+00 : f32
    %312 = vector.broadcast %cst_86 : f32 to vector<2x32xf32>
    %313 = arith.subf %312, %306 : vector<2x32xf32>
    %314 = arith.mulf %313, %311 : vector<2x32xf32>
    %315 = arith.mulf %306, %290 : vector<2x32xf32>
    %316 = arith.addf %314, %315 : vector<2x32xf32>
    %cst_87 = arith.constant dense<0.000000e+00> : vector<2x128xf32>
    %317 = tpu.matmul %125, %233, %cst_87 {dimension_numbers = #tpu.dot_dimension_numbers<[1], [0], [0], [1], [0, 0, 1, 1], [], []>} : vector<2x32xf32>, vector<32x128xf32>, vector<2x128xf32> -> vector<2x128xf32>
    %cst_88 = arith.constant dense<0.000000e+00> : vector<2x128xf32>
    %318 = tpu.matmul %316, %234, %cst_88 {dimension_numbers = #tpu.dot_dimension_numbers<[1], [0], [0], [1], [0, 0, 1, 1], [], []>} : vector<2x32xf32>, vector<32x128xf32>, vector<2x128xf32> -> vector<2x128xf32>
    %319 = arith.addf %317, %318 : vector<2x128xf32>
    %320 = arith.addf %319, %237 : vector<2x128xf32>
    %321 = vector.extract_strided_slice %320 {offsets = [0, 0], sizes = [2, 32], strides = [1, 1]} : vector<2x128xf32> to vector<2x32xf32>
    %322 = arith.negf %321 : vector<2x32xf32>
    %323 = math.exp %322 : vector<2x32xf32>
    %cst_89 = arith.constant 1.000000e+00 : f32
    %324 = vector.broadcast %cst_89 : f32 to vector<2x32xf32>
    %325 = arith.addf %324, %323 : vector<2x32xf32>
    %326 = arith.divf %324, %325 : vector<2x32xf32>
    %327 = vector.extract_strided_slice %320 {offsets = [0, 32], sizes = [2, 32], strides = [1, 1]} : vector<2x128xf32> to vector<2x32xf32>
    %328 = arith.negf %327 : vector<2x32xf32>
    %329 = math.exp %328 : vector<2x32xf32>
    %cst_90 = arith.constant 1.000000e+00 : f32
    %330 = vector.broadcast %cst_90 : f32 to vector<2x32xf32>
    %331 = arith.addf %330, %329 : vector<2x32xf32>
    %332 = arith.divf %330, %331 : vector<2x32xf32>
    %333 = vector.extract_strided_slice %320 {offsets = [0, 64], sizes = [2, 32], strides = [1, 1]} : vector<2x128xf32> to vector<2x32xf32>
    %334 = vector.extract_strided_slice %320 {offsets = [0, 96], sizes = [2, 32], strides = [1, 1]} : vector<2x128xf32> to vector<2x32xf32>
    %335 = arith.mulf %326, %334 : vector<2x32xf32>
    %336 = arith.addf %333, %335 : vector<2x32xf32>
    %337 = math.tanh %336 : vector<2x32xf32>
    %cst_91 = arith.constant 1.000000e+00 : f32
    %338 = vector.broadcast %cst_91 : f32 to vector<2x32xf32>
    %339 = arith.subf %338, %332 : vector<2x32xf32>
    %340 = arith.mulf %339, %337 : vector<2x32xf32>
    %341 = arith.mulf %332, %316 : vector<2x32xf32>
    %342 = arith.addf %340, %341 : vector<2x32xf32>
    %cst_92 = arith.constant dense<0.000000e+00> : vector<2x128xf32>
    %343 = tpu.matmul %151, %233, %cst_92 {dimension_numbers = #tpu.dot_dimension_numbers<[1], [0], [0], [1], [0, 0, 1, 1], [], []>} : vector<2x32xf32>, vector<32x128xf32>, vector<2x128xf32> -> vector<2x128xf32>
    %cst_93 = arith.constant dense<0.000000e+00> : vector<2x128xf32>
    %344 = tpu.matmul %342, %234, %cst_93 {dimension_numbers = #tpu.dot_dimension_numbers<[1], [0], [0], [1], [0, 0, 1, 1], [], []>} : vector<2x32xf32>, vector<32x128xf32>, vector<2x128xf32> -> vector<2x128xf32>
    %345 = arith.addf %343, %344 : vector<2x128xf32>
    %346 = arith.addf %345, %237 : vector<2x128xf32>
    %347 = vector.extract_strided_slice %346 {offsets = [0, 0], sizes = [2, 32], strides = [1, 1]} : vector<2x128xf32> to vector<2x32xf32>
    %348 = arith.negf %347 : vector<2x32xf32>
    %349 = math.exp %348 : vector<2x32xf32>
    %cst_94 = arith.constant 1.000000e+00 : f32
    %350 = vector.broadcast %cst_94 : f32 to vector<2x32xf32>
    %351 = arith.addf %350, %349 : vector<2x32xf32>
    %352 = arith.divf %350, %351 : vector<2x32xf32>
    %353 = vector.extract_strided_slice %346 {offsets = [0, 32], sizes = [2, 32], strides = [1, 1]} : vector<2x128xf32> to vector<2x32xf32>
    %354 = arith.negf %353 : vector<2x32xf32>
    %355 = math.exp %354 : vector<2x32xf32>
    %cst_95 = arith.constant 1.000000e+00 : f32
    %356 = vector.broadcast %cst_95 : f32 to vector<2x32xf32>
    %357 = arith.addf %356, %355 : vector<2x32xf32>
    %358 = arith.divf %356, %357 : vector<2x32xf32>
    %359 = vector.extract_strided_slice %346 {offsets = [0, 64], sizes = [2, 32], strides = [1, 1]} : vector<2x128xf32> to vector<2x32xf32>
    %360 = vector.extract_strided_slice %346 {offsets = [0, 96], sizes = [2, 32], strides = [1, 1]} : vector<2x128xf32> to vector<2x32xf32>
    %361 = arith.mulf %352, %360 : vector<2x32xf32>
    %362 = arith.addf %359, %361 : vector<2x32xf32>
    %363 = math.tanh %362 : vector<2x32xf32>
    %cst_96 = arith.constant 1.000000e+00 : f32
    %364 = vector.broadcast %cst_96 : f32 to vector<2x32xf32>
    %365 = arith.subf %364, %358 : vector<2x32xf32>
    %366 = arith.mulf %365, %363 : vector<2x32xf32>
    %367 = arith.mulf %358, %342 : vector<2x32xf32>
    %368 = arith.addf %366, %367 : vector<2x32xf32>
    %cst_97 = arith.constant dense<0.000000e+00> : vector<2x128xf32>
    %369 = tpu.matmul %177, %233, %cst_97 {dimension_numbers = #tpu.dot_dimension_numbers<[1], [0], [0], [1], [0, 0, 1, 1], [], []>} : vector<2x32xf32>, vector<32x128xf32>, vector<2x128xf32> -> vector<2x128xf32>
    %cst_98 = arith.constant dense<0.000000e+00> : vector<2x128xf32>
    %370 = tpu.matmul %368, %234, %cst_98 {dimension_numbers = #tpu.dot_dimension_numbers<[1], [0], [0], [1], [0, 0, 1, 1], [], []>} : vector<2x32xf32>, vector<32x128xf32>, vector<2x128xf32> -> vector<2x128xf32>
    %371 = arith.addf %369, %370 : vector<2x128xf32>
    %372 = arith.addf %371, %237 : vector<2x128xf32>
    %373 = vector.extract_strided_slice %372 {offsets = [0, 0], sizes = [2, 32], strides = [1, 1]} : vector<2x128xf32> to vector<2x32xf32>
    %374 = arith.negf %373 : vector<2x32xf32>
    %375 = math.exp %374 : vector<2x32xf32>
    %cst_99 = arith.constant 1.000000e+00 : f32
    %376 = vector.broadcast %cst_99 : f32 to vector<2x32xf32>
    %377 = arith.addf %376, %375 : vector<2x32xf32>
    %378 = arith.divf %376, %377 : vector<2x32xf32>
    %379 = vector.extract_strided_slice %372 {offsets = [0, 32], sizes = [2, 32], strides = [1, 1]} : vector<2x128xf32> to vector<2x32xf32>
    %380 = arith.negf %379 : vector<2x32xf32>
    %381 = math.exp %380 : vector<2x32xf32>
    %cst_100 = arith.constant 1.000000e+00 : f32
    %382 = vector.broadcast %cst_100 : f32 to vector<2x32xf32>
    %383 = arith.addf %382, %381 : vector<2x32xf32>
    %384 = arith.divf %382, %383 : vector<2x32xf32>
    %385 = vector.extract_strided_slice %372 {offsets = [0, 64], sizes = [2, 32], strides = [1, 1]} : vector<2x128xf32> to vector<2x32xf32>
    %386 = vector.extract_strided_slice %372 {offsets = [0, 96], sizes = [2, 32], strides = [1, 1]} : vector<2x128xf32> to vector<2x32xf32>
    %387 = arith.mulf %378, %386 : vector<2x32xf32>
    %388 = arith.addf %385, %387 : vector<2x32xf32>
    %389 = math.tanh %388 : vector<2x32xf32>
    %cst_101 = arith.constant 1.000000e+00 : f32
    %390 = vector.broadcast %cst_101 : f32 to vector<2x32xf32>
    %391 = arith.subf %390, %384 : vector<2x32xf32>
    %392 = arith.mulf %391, %389 : vector<2x32xf32>
    %393 = arith.mulf %384, %368 : vector<2x32xf32>
    %394 = arith.addf %392, %393 : vector<2x32xf32>
    %cst_102 = arith.constant dense<0.000000e+00> : vector<2x128xf32>
    %395 = tpu.matmul %203, %233, %cst_102 {dimension_numbers = #tpu.dot_dimension_numbers<[1], [0], [0], [1], [0, 0, 1, 1], [], []>} : vector<2x32xf32>, vector<32x128xf32>, vector<2x128xf32> -> vector<2x128xf32>
    %cst_103 = arith.constant dense<0.000000e+00> : vector<2x128xf32>
    %396 = tpu.matmul %394, %234, %cst_103 {dimension_numbers = #tpu.dot_dimension_numbers<[1], [0], [0], [1], [0, 0, 1, 1], [], []>} : vector<2x32xf32>, vector<32x128xf32>, vector<2x128xf32> -> vector<2x128xf32>
    %397 = arith.addf %395, %396 : vector<2x128xf32>
    %398 = arith.addf %397, %237 : vector<2x128xf32>
    %399 = vector.extract_strided_slice %398 {offsets = [0, 0], sizes = [2, 32], strides = [1, 1]} : vector<2x128xf32> to vector<2x32xf32>
    %400 = arith.negf %399 : vector<2x32xf32>
    %401 = math.exp %400 : vector<2x32xf32>
    %cst_104 = arith.constant 1.000000e+00 : f32
    %402 = vector.broadcast %cst_104 : f32 to vector<2x32xf32>
    %403 = arith.addf %402, %401 : vector<2x32xf32>
    %404 = arith.divf %402, %403 : vector<2x32xf32>
    %405 = vector.extract_strided_slice %398 {offsets = [0, 32], sizes = [2, 32], strides = [1, 1]} : vector<2x128xf32> to vector<2x32xf32>
    %406 = arith.negf %405 : vector<2x32xf32>
    %407 = math.exp %406 : vector<2x32xf32>
    %cst_105 = arith.constant 1.000000e+00 : f32
    %408 = vector.broadcast %cst_105 : f32 to vector<2x32xf32>
    %409 = arith.addf %408, %407 : vector<2x32xf32>
    %410 = arith.divf %408, %409 : vector<2x32xf32>
    %411 = vector.extract_strided_slice %398 {offsets = [0, 64], sizes = [2, 32], strides = [1, 1]} : vector<2x128xf32> to vector<2x32xf32>
    %412 = vector.extract_strided_slice %398 {offsets = [0, 96], sizes = [2, 32], strides = [1, 1]} : vector<2x128xf32> to vector<2x32xf32>
    %413 = arith.mulf %404, %412 : vector<2x32xf32>
    %414 = arith.addf %411, %413 : vector<2x32xf32>
    %415 = math.tanh %414 : vector<2x32xf32>
    %cst_106 = arith.constant 1.000000e+00 : f32
    %416 = vector.broadcast %cst_106 : f32 to vector<2x32xf32>
    %417 = arith.subf %416, %410 : vector<2x32xf32>
    %418 = arith.mulf %417, %415 : vector<2x32xf32>
    %419 = arith.mulf %410, %394 : vector<2x32xf32>
    %420 = arith.addf %418, %419 : vector<2x32xf32>
    %cst_107 = arith.constant dense<0.000000e+00> : vector<2x128xf32>
    %421 = tpu.matmul %229, %233, %cst_107 {dimension_numbers = #tpu.dot_dimension_numbers<[1], [0], [0], [1], [0, 0, 1, 1], [], []>} : vector<2x32xf32>, vector<32x128xf32>, vector<2x128xf32> -> vector<2x128xf32>
    %cst_108 = arith.constant dense<0.000000e+00> : vector<2x128xf32>
    %422 = tpu.matmul %420, %234, %cst_108 {dimension_numbers = #tpu.dot_dimension_numbers<[1], [0], [0], [1], [0, 0, 1, 1], [], []>} : vector<2x32xf32>, vector<32x128xf32>, vector<2x128xf32> -> vector<2x128xf32>
    %423 = arith.addf %421, %422 : vector<2x128xf32>
    %424 = arith.addf %423, %237 : vector<2x128xf32>
    %425 = vector.extract_strided_slice %424 {offsets = [0, 0], sizes = [2, 32], strides = [1, 1]} : vector<2x128xf32> to vector<2x32xf32>
    %426 = arith.negf %425 : vector<2x32xf32>
    %427 = math.exp %426 : vector<2x32xf32>
    %cst_109 = arith.constant 1.000000e+00 : f32
    %428 = vector.broadcast %cst_109 : f32 to vector<2x32xf32>
    %429 = arith.addf %428, %427 : vector<2x32xf32>
    %430 = arith.divf %428, %429 : vector<2x32xf32>
    %431 = vector.extract_strided_slice %424 {offsets = [0, 32], sizes = [2, 32], strides = [1, 1]} : vector<2x128xf32> to vector<2x32xf32>
    %432 = arith.negf %431 : vector<2x32xf32>
    %433 = math.exp %432 : vector<2x32xf32>
    %cst_110 = arith.constant 1.000000e+00 : f32
    %434 = vector.broadcast %cst_110 : f32 to vector<2x32xf32>
    %435 = arith.addf %434, %433 : vector<2x32xf32>
    %436 = arith.divf %434, %435 : vector<2x32xf32>
    %437 = vector.extract_strided_slice %424 {offsets = [0, 64], sizes = [2, 32], strides = [1, 1]} : vector<2x128xf32> to vector<2x32xf32>
    %438 = vector.extract_strided_slice %424 {offsets = [0, 96], sizes = [2, 32], strides = [1, 1]} : vector<2x128xf32> to vector<2x32xf32>
    %439 = arith.mulf %430, %438 : vector<2x32xf32>
    %440 = arith.addf %437, %439 : vector<2x32xf32>
    %441 = math.tanh %440 : vector<2x32xf32>
    %cst_111 = arith.constant 1.000000e+00 : f32
    %442 = vector.broadcast %cst_111 : f32 to vector<2x32xf32>
    %443 = arith.subf %442, %436 : vector<2x32xf32>
    %444 = arith.mulf %443, %441 : vector<2x32xf32>
    %445 = arith.mulf %436, %420 : vector<2x32xf32>
    %446 = arith.addf %444, %445 : vector<2x32xf32>
    %c1_112 = arith.constant 1 : index
    %c0_113 = arith.constant 0 : index
    %c0_114 = arith.constant 0 : index
    %447 = vector.load %arg8[%c1_112, %c0_113, %c0_114] : memref<2x2x32xf32, #tpu.memory_space<vmem>>, vector<1x2x32xf32>
    %448 = vector.shape_cast %447 : vector<1x2x32xf32> to vector<2x32xf32>
    %449 = vector.shape_cast %446 : vector<2x32xf32> to vector<1x2x32xf32>
    tpu.vector_store %arg8[%c1_112, %c0_113, %c0_114], %449 {strides = array<i32>} : memref<2x2x32xf32, #tpu.memory_space<vmem>>, vector<1x2x32xf32>,
    %c0_115 = arith.constant 0 : index
    %c0_116 = arith.constant 0 : index
    %c0_117 = arith.constant 0 : index
    %450 = vector.load %arg7[%c0_115, %c0_116, %c0_117] : memref<8x2x32xf32, #tpu.memory_space<vmem>>, vector<1x2x32xf32>
    %451 = vector.shape_cast %450 : vector<1x2x32xf32> to vector<2x32xf32>
    %452 = vector.shape_cast %264 : vector<2x32xf32> to vector<1x2x32xf32>
    tpu.vector_store %arg7[%c0_115, %c0_116, %c0_117], %452 {strides = array<i32>} : memref<8x2x32xf32, #tpu.memory_space<vmem>>, vector<1x2x32xf32>,
    %c1_118 = arith.constant 1 : index
    %c0_119 = arith.constant 0 : index
    %c0_120 = arith.constant 0 : index
    %453 = vector.load %arg7[%c1_118, %c0_119, %c0_120] : memref<8x2x32xf32, #tpu.memory_space<vmem>>, vector<1x2x32xf32>
    %454 = vector.shape_cast %453 : vector<1x2x32xf32> to vector<2x32xf32>
    %455 = vector.shape_cast %290 : vector<2x32xf32> to vector<1x2x32xf32>
    tpu.vector_store %arg7[%c1_118, %c0_119, %c0_120], %455 {strides = array<i32>} : memref<8x2x32xf32, #tpu.memory_space<vmem>>, vector<1x2x32xf32>,
    %c2_121 = arith.constant 2 : index
    %c0_122 = arith.constant 0 : index
    %c0_123 = arith.constant 0 : index
    %456 = vector.load %arg7[%c2_121, %c0_122, %c0_123] : memref<8x2x32xf32, #tpu.memory_space<vmem>>, vector<1x2x32xf32>
    %457 = vector.shape_cast %456 : vector<1x2x32xf32> to vector<2x32xf32>
    %458 = vector.shape_cast %316 : vector<2x32xf32> to vector<1x2x32xf32>
    tpu.vector_store %arg7[%c2_121, %c0_122, %c0_123], %458 {strides = array<i32>} : memref<8x2x32xf32, #tpu.memory_space<vmem>>, vector<1x2x32xf32>,
    %c3_124 = arith.constant 3 : index
    %c0_125 = arith.constant 0 : index
    %c0_126 = arith.constant 0 : index
    %459 = vector.load %arg7[%c3_124, %c0_125, %c0_126] : memref<8x2x32xf32, #tpu.memory_space<vmem>>, vector<1x2x32xf32>
    %460 = vector.shape_cast %459 : vector<1x2x32xf32> to vector<2x32xf32>
    %461 = vector.shape_cast %342 : vector<2x32xf32> to vector<1x2x32xf32>
    tpu.vector_store %arg7[%c3_124, %c0_125, %c0_126], %461 {strides = array<i32>} : memref<8x2x32xf32, #tpu.memory_space<vmem>>, vector<1x2x32xf32>,
    %c4_127 = arith.constant 4 : index
    %c0_128 = arith.constant 0 : index
    %c0_129 = arith.constant 0 : index
    %462 = vector.load %arg7[%c4_127, %c0_128, %c0_129] : memref<8x2x32xf32, #tpu.memory_space<vmem>>, vector<1x2x32xf32>
    %463 = vector.shape_cast %462 : vector<1x2x32xf32> to vector<2x32xf32>
    %464 = vector.shape_cast %368 : vector<2x32xf32> to vector<1x2x32xf32>
    tpu.vector_store %arg7[%c4_127, %c0_128, %c0_129], %464 {strides = array<i32>} : memref<8x2x32xf32, #tpu.memory_space<vmem>>, vector<1x2x32xf32>,
    %c5_130 = arith.constant 5 : index
    %c0_131 = arith.constant 0 : index
    %c0_132 = arith.constant 0 : index
    %465 = vector.load %arg7[%c5_130, %c0_131, %c0_132] : memref<8x2x32xf32, #tpu.memory_space<vmem>>, vector<1x2x32xf32>
    %466 = vector.shape_cast %465 : vector<1x2x32xf32> to vector<2x32xf32>
    %467 = vector.shape_cast %394 : vector<2x32xf32> to vector<1x2x32xf32>
    tpu.vector_store %arg7[%c5_130, %c0_131, %c0_132], %467 {strides = array<i32>} : memref<8x2x32xf32, #tpu.memory_space<vmem>>, vector<1x2x32xf32>,
    %c6_133 = arith.constant 6 : index
    %c0_134 = arith.constant 0 : index
    %c0_135 = arith.constant 0 : index
    %468 = vector.load %arg7[%c6_133, %c0_134, %c0_135] : memref<8x2x32xf32, #tpu.memory_space<vmem>>, vector<1x2x32xf32>
    %469 = vector.shape_cast %468 : vector<1x2x32xf32> to vector<2x32xf32>
    %470 = vector.shape_cast %420 : vector<2x32xf32> to vector<1x2x32xf32>
    tpu.vector_store %arg7[%c6_133, %c0_134, %c0_135], %470 {strides = array<i32>} : memref<8x2x32xf32, #tpu.memory_space<vmem>>, vector<1x2x32xf32>,
    %c7_136 = arith.constant 7 : index
    %c0_137 = arith.constant 0 : index
    %c0_138 = arith.constant 0 : index
    %471 = vector.load %arg7[%c7_136, %c0_137, %c0_138] : memref<8x2x32xf32, #tpu.memory_space<vmem>>, vector<1x2x32xf32>
    %472 = vector.shape_cast %471 : vector<1x2x32xf32> to vector<2x32xf32>
    %473 = vector.shape_cast %446 : vector<2x32xf32> to vector<1x2x32xf32>
    tpu.vector_store %arg7[%c7_136, %c0_137, %c0_138], %473 {strides = array<i32>} : memref<8x2x32xf32, #tpu.memory_space<vmem>>, vector<1x2x32xf32>,
    return
  }
}

</mosaic_0001>

<llo_original>
// kernel: tpu_custom_call.1
$region0: #{tpu_custom_call.1}
  #allocation0 [shape = 'u32[]', space=smem, size = 0x4, offset = 0x4, fixed_abs, tag = 'smem constant byte address 0x4 - core index']
  #allocation1 [shape = 'u32[72,128]{1,0:T(1,128)}', space=vmem, size = 0x9000, scoped, tag = 'internal scratch']
  %s0 = inlined_call_operand.hbm [shape: f32[8,2,16], index: 0, kind: input, shape index: {}]
  %s1 = inlined_call_operand.hbm [shape: f32[16,128], index: 1, kind: input, shape index: {}]
  %s2 = inlined_call_operand.hbm [shape: f32[32,128], index: 2, kind: input, shape index: {}]
  %s3 = inlined_call_operand.vmem [shape: f32[1,128], index: 3, kind: input, shape index: {}]
  %s4 = inlined_call_operand.hbm [shape: f32[32,128], index: 4, kind: input, shape index: {}]
  %s5 = inlined_call_operand.hbm [shape: f32[32,128], index: 5, kind: input, shape index: {}]
  %s6 = inlined_call_operand.vmem [shape: f32[1,128], index: 6, kind: input, shape index: {}]
  %s7 = inlined_call_operand.hbm [shape: f32[8,2,32], index: 7, kind: output, shape index: {0}]
  %s8 = inlined_call_operand.hbm [shape: f32[2,2,32], index: 8, kind: output, shape index: {1}]
  %9 = xla_tuple %s7, %s8
  %s10 = sld [smem:[#allocation0]]
  $region66: #{tpu_custom_call.1} parent=0
    _
  %s12 = ssub.s32 1, %s10
  %s13 = scalar_select 0, %s12, %s10
  $region1: #{tpu_custom_call.1} parent=0
    #allocation2 [shape = 'u8[8192]{0}', space=vmem, size = 0x2000, scoped, tag = 'input window, operand 0, single buffered']
    #allocation3 [shape = 's32[1]{0}', space=sflag, size = 0x4, scoped, tag = 'scoped memory for tpu_custom_call.1']
    #allocation4 [shape = 's32[1]{0}', space=sflag, size = 0x4, scoped, tag = 'scoped memory for tpu_custom_call.1']
    #allocation5 [shape = 'u8[8192]{0}', space=vmem, size = 0x2000, scoped, tag = 'input window, operand 1, single buffered']
    #allocation6 [shape = 's32[1]{0}', space=sflag, size = 0x4, scoped, tag = 'scoped memory for tpu_custom_call.1']
    #allocation7 [shape = 'u8[16384]{0}', space=vmem, size = 0x4000, scoped, tag = 'input window, operand 2, single buffered']
    #allocation8 [shape = 'u8[16384]{0}', space=vmem, size = 0x4000, scoped, tag = 'input window, operand 4, single buffered']
    #allocation9 [shape = 's32[1]{0}', space=sflag, size = 0x4, scoped, tag = 'scoped memory for tpu_custom_call.1']
    #allocation10 [shape = 'u8[16384]{0}', space=vmem, size = 0x4000, scoped, tag = 'input window, operand 5, single buffered']
    #allocation11 [shape = 'u8[8192]{0}', space=vmem, size = 0x2000, scoped, tag = 'output window, operand 0, single buffered']
    #allocation12 [shape = 'u8[2048]{0}', space=vmem, size = 0x800, scoped, tag = 'output window, operand 1, single buffered']
    #allocation13 [shape = 's32[1]{0}', space=sflag, size = 0x4, scoped, tag = 'scoped memory for tpu_custom_call.1']
    %14 = vsyncpa [#allocation3], 0
    %15 = vsyncpa [#allocation6], 0
    %16 = vsyncpa [#allocation9], 0
    %17 = vsyncpa [#allocation4], 0
    %18 = vsyncpa [#allocation13], 0
    // Predicated region
    $region2: #{tpu_custom_call.1} parent=1 // pred_check
      _
    $region3: #{tpu_custom_call.1} parent=1 // pred_check_branch
      %20 = sbr.rel (0) target = $region5
    $region4: #{tpu_custom_call.1} parent=1 // pred_region
      %22 = vsyncadd [#allocation3], 0
      %s23 = sshll.u32 %s0, 4
      %s24 = int_to_ptr.hbm [resolvable:$true] %s23
      %s25 = sshll.u32 [#allocation2], 4
      %s26 = int_to_ptr.vmem [resolvable:$true] %s25
      %31 = dma.hbm_to_vmem [thread:$0]  %s24, 256, %s26, [#allocation3], 32, 32, 2
    $region5: #{tpu_custom_call.1} parent=1 // pred_fallthru
      _
    // Predicated region
    $region6: #{tpu_custom_call.1} parent=1 // pred_check
      _
    $region7: #{tpu_custom_call.1} parent=1 // pred_check_branch
      %33 = sbr.rel (0) target = $region9
    $region8: #{tpu_custom_call.1} parent=1 // pred_region
      %35 = vsyncadd [#allocation6], 0
      %s36 = sshll.u32 %s1, 4
      %s37 = int_to_ptr.hbm [resolvable:$true] %s36
      %s38 = sshll.u32 [#allocation5], 4
      %s39 = int_to_ptr.vmem [resolvable:$true] %s38
      %44 = dma.hbm_to_vmem [thread:$0]  %s37, 256, %s39, [#allocation6], 128, 128, 8
    $region9: #{tpu_custom_call.1} parent=1 // pred_fallthru
      _
    // Predicated region
    $region10: #{tpu_custom_call.1} parent=1 // pred_check
      _
    $region11: #{tpu_custom_call.1} parent=1 // pred_check_branch
      %46 = sbr.rel (0) target = $region13
    $region12: #{tpu_custom_call.1} parent=1 // pred_region
      %48 = vsyncadd [#allocation6], 0
      %s49 = sshll.u32 %s2, 4
      %s50 = int_to_ptr.hbm [resolvable:$true] %s49
      %s51 = sshll.u32 [#allocation7], 4
      %s52 = int_to_ptr.vmem [resolvable:$true] %s51
      %57 = dma.hbm_to_vmem [thread:$0]  %s50, 512, %s52, [#allocation6], 128, 128, 8
    $region13: #{tpu_custom_call.1} parent=1 // pred_fallthru
      _
    // Predicated region
    $region14: #{tpu_custom_call.1} parent=1 // pred_check
      _
    $region15: #{tpu_custom_call.1} parent=1 // pred_check_branch
      %59 = sbr.rel (0) target = $region17
    $region16: #{tpu_custom_call.1} parent=1 // pred_region
      _
    $region17: #{tpu_custom_call.1} parent=1 // pred_fallthru
      _
    // Predicated region
    $region18: #{tpu_custom_call.1} parent=1 // pred_check
      _
    $region19: #{tpu_custom_call.1} parent=1 // pred_check_branch
      %61 = sbr.rel (0) target = $region21
    $region20: #{tpu_custom_call.1} parent=1 // pred_region
      %63 = vsyncadd [#allocation9], 0
      %s64 = sshll.u32 %s4, 4
      %s65 = int_to_ptr.hbm [resolvable:$true] %s64
      %s66 = sshll.u32 [#allocation8], 4
      %s67 = int_to_ptr.vmem [resolvable:$true] %s66
      %72 = dma.hbm_to_vmem [thread:$0]  %s65, 512, %s67, [#allocation9], 128, 128, 8
    $region21: #{tpu_custom_call.1} parent=1 // pred_fallthru
      _
    // Predicated region
    $region22: #{tpu_custom_call.1} parent=1 // pred_check
      _
    $region23: #{tpu_custom_call.1} parent=1 // pred_check_branch
      %74 = sbr.rel (0) target = $region25
    $region24: #{tpu_custom_call.1} parent=1 // pred_region
      %76 = vsyncadd [#allocation9], 0
      %s77 = sshll.u32 %s5, 4
      %s78 = int_to_ptr.hbm [resolvable:$true] %s77
      %s79 = sshll.u32 [#allocation10], 4
      %s80 = int_to_ptr.vmem [resolvable:$true] %s79
      %85 = dma.hbm_to_vmem [thread:$0]  %s78, 512, %s80, [#allocation9], 128, 128, 8
    $region25: #{tpu_custom_call.1} parent=1 // pred_fallthru
      _
    // Predicated region
    $region26: #{tpu_custom_call.1} parent=1 // pred_check
      _
    $region27: #{tpu_custom_call.1} parent=1 // pred_check_branch
      %87 = sbr.rel (0) target = $region29
    $region28: #{tpu_custom_call.1} parent=1 // pred_region
      _
    $region29: #{tpu_custom_call.1} parent=1 // pred_fallthru
      _
    // Predicated region
    $region30: #{tpu_custom_call.1} parent=1 // pred_check
      _
    $region31: #{tpu_custom_call.1} parent=1 // pred_check_branch
      %89 = sbr.rel (0) target = $region33
    $region32: #{tpu_custom_call.1} parent=1 // pred_region
      %91 = dma.done [#allocation3], 256
    $region33: #{tpu_custom_call.1} parent=1 // pred_fallthru
      _
    // Predicated region
    $region34: #{tpu_custom_call.1} parent=1 // pred_check
      _
    $region35: #{tpu_custom_call.1} parent=1 // pred_check_branch
      %93 = sbr.rel (0) target = $region37
    $region36: #{tpu_custom_call.1} parent=1 // pred_region
      %95 = dma.done [#allocation6], 256
    $region37: #{tpu_custom_call.1} parent=1 // pred_fallthru
      _
    // Predicated region
    $region38: #{tpu_custom_call.1} parent=1 // pred_check
      _
    $region39: #{tpu_custom_call.1} parent=1 // pred_check_branch
      %97 = sbr.rel (0) target = $region41
    $region40: #{tpu_custom_call.1} parent=1 // pred_region
      %99 = dma.done [#allocation6], 512
    $region41: #{tpu_custom_call.1} parent=1 // pred_fallthru
      _
    // Predicated region
    $region42: #{tpu_custom_call.1} parent=1 // pred_check
      _
    $region43: #{tpu_custom_call.1} parent=1 // pred_check_branch
      %101 = sbr.rel (0) target = $region45
    $region44: #{tpu_custom_call.1} parent=1 // pred_region
      %103 = dma.done [#allocation9], 512
    $region45: #{tpu_custom_call.1} parent=1 // pred_fallthru
      _
    // Predicated region
    $region46: #{tpu_custom_call.1} parent=1 // pred_check
      _
    $region47: #{tpu_custom_call.1} parent=1 // pred_check_branch
      %105 = sbr.rel (0) target = $region49
    $region48: #{tpu_custom_call.1} parent=1 // pred_region
      %107 = dma.done [#allocation9], 512
    $region49: #{tpu_custom_call.1} parent=1 // pred_fallthru
      _
    %v108 = vld [vmem:[#allocation2] sm:$0x3]
    %s109 = scalar_lea.vmem [#allocation2], 2
    %v110 = vld [vmem:[%s109] sm:$0x3]
    %s111 = scalar_lea.vmem [#allocation2], 4
    %v112 = vld [vmem:[%s111] sm:$0x3]
    %s113 = scalar_lea.vmem [#allocation2], 6
    %v114 = vld [vmem:[%s113] sm:$0x3]
    %s115 = scalar_lea.vmem [#allocation2], 8
    %v116 = vld [vmem:[%s115] sm:$0x3]
    %s117 = scalar_lea.vmem [#allocation2], 10
    %v118 = vld [vmem:[%s117] sm:$0x3]
    %s119 = scalar_lea.vmem [#allocation2], 12
    %v120 = vld [vmem:[%s119] sm:$0x3]
    %s121 = scalar_lea.vmem [#allocation2], 14
    %v122 = vld [vmem:[%s121] sm:$0x3]
    %v123 = vld [vmem:[#allocation5] sm:$0xff]
    %v124 = vld [vmem:[#allocation5 + $0x8] sm:$0xff]
    %v125 = vld [vmem:[#allocation7] sm:$0xff]
    %v126 = vld [vmem:[#allocation7 + $0x8] sm:$0xff]
    %v127 = vld [vmem:[#allocation7 + $0x10] sm:$0xff]
    %v128 = vld [vmem:[#allocation7 + $0x18] sm:$0xff]
    %v129 = vld [vmem:[%s3] sm:$0x1]
    %v131 = vperm.slane %v129, 0
    %vm133 = vcmask 261120
    %v135 = vsel %vm133, 0.0, 0
    %137 = vmatpush.msra.mxu0 0.0
    %138 = vmatpush.msra.mxu0 0.0
    %139 = vmatpush.msra.mxu0 0.0
    %140 = vmatpush.msra.mxu0 0.0
    %141 = vmatpush.msra.mxu0 0.0
    %142 = vmatpush.msra.mxu0 0.0
    %143 = vmatpush.msra.mxu0 0.0
    %144 = vmatpush.msra.mxu0 0.0
    %145 = vmatpush.msra.mxu0 0.0
    %146 = vmatpush.msra.mxu0 0.0
    %147 = vmatpush.msra.mxu0 0.0
    %148 = vmatpush.msra.mxu0 0.0
    %149 = vmatpush.msra.mxu0 %v128
    %150 = vmatpush.msra.mxu0 %v127
    %151 = vmatpush.msra.mxu0 %v126
    %152 = vmatpush.msra.mxu0 %v125
    %153 = vmatmul.f32.gmra.mxu0 %v135
    %v154 = vpop.f32.mrf.mxu0
    %v155 = vadd.f32 0.0, %v154
    %156 = vdwg.mxu0
    %vm157 = vcmask 130048
    %v159 = vsel %vm157, %v108, 0
    %161 = vmatpush.msra.mxu0 0.0
    %162 = vmatpush.msra.mxu0 0.0
    %163 = vmatpush.msra.mxu0 0.0
    %164 = vmatpush.msra.mxu0 0.0
    %165 = vmatpush.msra.mxu0 0.0
    %166 = vmatpush.msra.mxu0 0.0
    %167 = vmatpush.msra.mxu0 0.0
    %168 = vmatpush.msra.mxu0 0.0
    %169 = vmatpush.msra.mxu0 0.0
    %170 = vmatpush.msra.mxu0 0.0
    %171 = vmatpush.msra.mxu0 0.0
    %172 = vmatpush.msra.mxu0 0.0
    %173 = vmatpush.msra.mxu0 0.0
    %174 = vmatpush.msra.mxu0 0.0
    %175 = vmatpush.msra.mxu0 %v124
    %176 = vmatpush.msra.mxu0 %v123
    %177 = vmatmul.f32.gmra.mxu0 %v159
    %v178 = vpop.f32.mrf.mxu0
    %v179 = vadd.f32 %v155, %v178
    %180 = vdwg.mxu0
    %v181 = vadd.f32 %v179, %v131
    %v182 = vxor.u32 %v181, 2147483648
    %v183 = vmul.f32 %v182, 1.442695
    %v184 = vpow.pop %v183
    %v185 = vadd.f32 %v184, 1.0
    %v186 = vrcp.pop %v185
    %v187 = vmul.f32 %v185, %v186
    %v188 = vsub.f32 1.0, %v187
    %v189 = vmul.f32 %v186, %v188
    %v190 = vadd.f32 %v186, %v189
    %vm191 = vweird.f32 %v185
    %vm192 = vweird.f32 %v186
    %vm193 = vmor %vm191, %vm192
    %v194 = vsel %vm193, %v186, %v190
    %v195 = vand.u32 2147483647, %v185
    %vm196 = vcmp.eq.f32.partialorder %v195, 8.507059e+37
    %v197 = vand.u32 %v185, 2147483648
    %v198 = vor.u32 1.1754944e-38, %v197
    %v199 = vsel %vm196, %v198, %v194
    %v200 = vmul.f32 1.0, %v199
    %202 = vrot.lane.b32.xlu0 %v181, 32
    %v203 = vpop.permute.xlu0 %202
    %v205 = vmul.f32 %v200, %v203
    %207 = vrot.lane.b32.xlu0 %v205, 64
    %v208 = vpop.permute.xlu0 %207
    %v210 = vadd.f32 %v181, %v208
    %v211 = vtanh.pop %v210
    %v212 = vsub.f32 1.0, %v200
    %214 = vrot.lane.b32.xlu0 %v211, 96
    %v215 = vpop.permute.xlu0 %214
    %v217 = vmul.f32 %v212, %v215
    %v218 = vmul.f32 %v200, 0.0
    %v219 = vadd.f32 %v217, %v218
    %221 = vrot.lane.b32.xlu0 %v219, 96
    %v222 = vpop.permute.xlu0 %221
    %v223 = vsel %vm133, %v222, 0
    %225 = vmatpush.msra.mxu0 0.0
    %226 = vmatpush.msra.mxu0 0.0
    %227 = vmatpush.msra.mxu0 0.0
    %228 = vmatpush.msra.mxu0 0.0
    %229 = vmatpush.msra.mxu0 0.0
    %230 = vmatpush.msra.mxu0 0.0
    %231 = vmatpush.msra.mxu0 0.0
    %232 = vmatpush.msra.mxu0 0.0
    %233 = vmatpush.msra.mxu0 0.0
    %234 = vmatpush.msra.mxu0 0.0
    %235 = vmatpush.msra.mxu0 0.0
    %236 = vmatpush.msra.mxu0 0.0
    %237 = vmatpush.msra.mxu0 %v128
    %238 = vmatpush.msra.mxu0 %v127
    %239 = vmatpush.msra.mxu0 %v126
    %240 = vmatpush.msra.mxu0 %v125
    %241 = vmatmul.f32.gmra.mxu0 %v223
    %v242 = vpop.f32.mrf.mxu0
    %v243 = vadd.f32 0.0, %v242
    %244 = vdwg.mxu0
    %v246 = vsel %vm157, %v110, 0
    %248 = vmatpush.msra.mxu0 0.0
    %249 = vmatpush.msra.mxu0 0.0
    %250 = vmatpush.msra.mxu0 0.0
    %251 = vmatpush.msra.mxu0 0.0
    %252 = vmatpush.msra.mxu0 0.0
    %253 = vmatpush.msra.mxu0 0.0
    %254 = vmatpush.msra.mxu0 0.0
    %255 = vmatpush.msra.mxu0 0.0
    %256 = vmatpush.msra.mxu0 0.0
    %257 = vmatpush.msra.mxu0 0.0
    %258 = vmatpush.msra.mxu0 0.0
    %259 = vmatpush.msra.mxu0 0.0
    %260 = vmatpush.msra.mxu0 0.0
    %261 = vmatpush.msra.mxu0 0.0
    %262 = vmatpush.msra.mxu0 %v124
    %263 = vmatpush.msra.mxu0 %v123
    %264 = vmatmul.f32.gmra.mxu0 %v246
    %v265 = vpop.f32.mrf.mxu0
    %v266 = vadd.f32 %v243, %v265
    %267 = vdwg.mxu0
    %v268 = vadd.f32 %v266, %v131
    %v269 = vxor.u32 %v268, 2147483648
    %v270 = vmul.f32 %v269, 1.442695
    %v271 = vpow.pop %v270
    %v272 = vadd.f32 %v271, 1.0
    %v273 = vrcp.pop %v272
    %v274 = vmul.f32 %v272, %v273
    %v275 = vsub.f32 1.0, %v274
    %v276 = vmul.f32 %v273, %v275
    %v277 = vadd.f32 %v273, %v276
    %vm278 = vweird.f32 %v272
    %vm279 = vweird.f32 %v273
    %vm280 = vmor %vm278, %vm279
    %v281 = vsel %vm280, %v273, %v277
    %v282 = vand.u32 2147483647, %v272
    %vm283 = vcmp.eq.f32.partialorder %v282, 8.507059e+37
    %v284 = vand.u32 %v272, 2147483648
    %v285 = vor.u32 1.1754944e-38, %v284
    %v286 = vsel %vm283, %v285, %v281
    %v287 = vmul.f32 1.0, %v286
    %289 = vrot.lane.b32.xlu0 %v268, 32
    %v290 = vpop.permute.xlu0 %289
    %v292 = vmul.f32 %v287, %v290
    %294 = vrot.lane.b32.xlu0 %v292, 64
    %v295 = vpop.permute.xlu0 %294
    %v297 = vadd.f32 %v268, %v295
    %v298 = vtanh.pop %v297
    %v299 = vsub.f32 1.0, %v287
    %301 = vrot.lane.b32.xlu0 %v298, 96
    %v302 = vpop.permute.xlu0 %301
    %v304 = vmul.f32 %v299, %v302
    %v305 = vmul.f32 %v287, %v219
    %v306 = vadd.f32 %v304, %v305
    %308 = vrot.lane.b32.xlu0 %v306, 96
    %v309 = vpop.permute.xlu0 %308
    %v310 = vsel %vm133, %v309, 0
    %312 = vmatpush.msra.mxu0 0.0
    %313 = vmatpush.msra.mxu0 0.0
    %314 = vmatpush.msra.mxu0 0.0
    %315 = vmatpush.msra.mxu0 0.0
    %316 = vmatpush.msra.mxu0 0.0
    %317 = vmatpush.msra.mxu0 0.0
    %318 = vmatpush.msra.mxu0 0.0
    %319 = vmatpush.msra.mxu0 0.0
    %320 = vmatpush.msra.mxu0 0.0
    %321 = vmatpush.msra.mxu0 0.0
    %322 = vmatpush.msra.mxu0 0.0
    %323 = vmatpush.msra.mxu0 0.0
    %324 = vmatpush.msra.mxu0 %v128
    %325 = vmatpush.msra.mxu0 %v127
    %326 = vmatpush.msra.mxu0 %v126
    %327 = vmatpush.msra.mxu0 %v125
    %328 = vmatmul.f32.gmra.mxu0 %v310
    %v329 = vpop.f32.mrf.mxu0
    %v330 = vadd.f32 0.0, %v329
    %331 = vdwg.mxu0
    %v333 = vsel %vm157, %v112, 0
    %335 = vmatpush.msra.mxu0 0.0
    %336 = vmatpush.msra.mxu0 0.0
    %337 = vmatpush.msra.mxu0 0.0
    %338 = vmatpush.msra.mxu0 0.0
    %339 = vmatpush.msra.mxu0 0.0
    %340 = vmatpush.msra.mxu0 0.0
    %341 = vmatpush.msra.mxu0 0.0
    %342 = vmatpush.msra.mxu0 0.0
    %343 = vmatpush.msra.mxu0 0.0
    %344 = vmatpush.msra.mxu0 0.0
    %345 = vmatpush.msra.mxu0 0.0
    %346 = vmatpush.msra.mxu0 0.0
    %347 = vmatpush.msra.mxu0 0.0
    %348 = vmatpush.msra.mxu0 0.0
    %349 = vmatpush.msra.mxu0 %v124
    %350 = vmatpush.msra.mxu0 %v123
    %351 = vmatmul.f32.gmra.mxu0 %v333
    %v352 = vpop.f32.mrf.mxu0
    %v353 = vadd.f32 %v330, %v352
    %354 = vdwg.mxu0
    %v355 = vadd.f32 %v353, %v131
    %v356 = vxor.u32 %v355, 2147483648
    %v357 = vmul.f32 %v356, 1.442695
    %v358 = vpow.pop %v357
    %v359 = vadd.f32 %v358, 1.0
    %v360 = vrcp.pop %v359
    %v361 = vmul.f32 %v359, %v360
    %v362 = vsub.f32 1.0, %v361
    %v363 = vmul.f32 %v360, %v362
    %v364 = vadd.f32 %v360, %v363
    %vm365 = vweird.f32 %v359
    %vm366 = vweird.f32 %v360
    %vm367 = vmor %vm365, %vm366
    %v368 = vsel %vm367, %v360, %v364
    %v369 = vand.u32 2147483647, %v359
    %vm370 = vcmp.eq.f32.partialorder %v369, 8.507059e+37
    %v371 = vand.u32 %v359, 2147483648
    %v372 = vor.u32 1.1754944e-38, %v371
    %v373 = vsel %vm370, %v372, %v368
    %v374 = vmul.f32 1.0, %v373
    %376 = vrot.lane.b32.xlu0 %v355, 32
    %v377 = vpop.permute.xlu0 %376
    %v379 = vmul.f32 %v374, %v377
    %381 = vrot.lane.b32.xlu0 %v379, 64
    %v382 = vpop.permute.xlu0 %381
    %v384 = vadd.f32 %v355, %v382
    %v385 = vtanh.pop %v384
    %v386 = vsub.f32 1.0, %v374
    %388 = vrot.lane.b32.xlu0 %v385, 96
    %v389 = vpop.permute.xlu0 %388
    %v391 = vmul.f32 %v386, %v389
    %v392 = vmul.f32 %v374, %v306
    %v393 = vadd.f32 %v391, %v392
    %395 = vrot.lane.b32.xlu0 %v393, 96
    %v396 = vpop.permute.xlu0 %395
    %v397 = vsel %vm133, %v396, 0
    %399 = vmatpush.msra.mxu0 0.0
    %400 = vmatpush.msra.mxu0 0.0
    %401 = vmatpush.msra.mxu0 0.0
    %402 = vmatpush.msra.mxu0 0.0
    %403 = vmatpush.msra.mxu0 0.0
    %404 = vmatpush.msra.mxu0 0.0
    %405 = vmatpush.msra.mxu0 0.0
    %406 = vmatpush.msra.mxu0 0.0
    %407 = vmatpush.msra.mxu0 0.0
    %408 = vmatpush.msra.mxu0 0.0
    %409 = vmatpush.msra.mxu0 0.0
    %410 = vmatpush.msra.mxu0 0.0
    %411 = vmatpush.msra.mxu0 %v128
    %412 = vmatpush.msra.mxu0 %v127
    %413 = vmatpush.msra.mxu0 %v126
    %414 = vmatpush.msra.mxu0 %v125
    %415 = vmatmul.f32.gmra.mxu0 %v397
    %v416 = vpop.f32.mrf.mxu0
    %v417 = vadd.f32 0.0, %v416
    %418 = vdwg.mxu0
    %v420 = vsel %vm157, %v114, 0
    %422 = vmatpush.msra.mxu0 0.0
    %423 = vmatpush.msra.mxu0 0.0
    %424 = vmatpush.msra.mxu0 0.0
    %425 = vmatpush.msra.mxu0 0.0
    %426 = vmatpush.msra.mxu0 0.0
    %427 = vmatpush.msra.mxu0 0.0
    %428 = vmatpush.msra.mxu0 0.0
    %429 = vmatpush.msra.mxu0 0.0
    %430 = vmatpush.msra.mxu0 0.0
    %431 = vmatpush.msra.mxu0 0.0
    %432 = vmatpush.msra.mxu0 0.0
    %433 = vmatpush.msra.mxu0 0.0
    %434 = vmatpush.msra.mxu0 0.0
    %435 = vmatpush.msra.mxu0 0.0
    %436 = vmatpush.msra.mxu0 %v124
    %437 = vmatpush.msra.mxu0 %v123
    %438 = vmatmul.f32.gmra.mxu0 %v420
    %v439 = vpop.f32.mrf.mxu0
    %v440 = vadd.f32 %v417, %v439
    %441 = vdwg.mxu0
    %v442 = vadd.f32 %v440, %v131
    %v443 = vxor.u32 %v442, 2147483648
    %v444 = vmul.f32 %v443, 1.442695
    %v445 = vpow.pop %v444
    %v446 = vadd.f32 %v445, 1.0
    %v447 = vrcp.pop %v446
    %v448 = vmul.f32 %v446, %v447
    %v449 = vsub.f32 1.0, %v448
    %v450 = vmul.f32 %v447, %v449
    %v451 = vadd.f32 %v447, %v450
    %vm452 = vweird.f32 %v446
    %vm453 = vweird.f32 %v447
    %vm454 = vmor %vm452, %vm453
    %v455 = vsel %vm454, %v447, %v451
    %v456 = vand.u32 2147483647, %v446
    %vm457 = vcmp.eq.f32.partialorder %v456, 8.507059e+37
    %v458 = vand.u32 %v446, 2147483648
    %v459 = vor.u32 1.1754944e-38, %v458
    %v460 = vsel %vm457, %v459, %v455
    %v461 = vmul.f32 1.0, %v460
    %463 = vrot.lane.b32.xlu0 %v442, 32
    %v464 = vpop.permute.xlu0 %463
    %v466 = vmul.f32 %v461, %v464
    %468 = vrot.lane.b32.xlu0 %v466, 64
    %v469 = vpop.permute.xlu0 %468
    %v471 = vadd.f32 %v442, %v469
    %v472 = vtanh.pop %v471
    %v473 = vsub.f32 1.0, %v461
    %475 = vrot.lane.b32.xlu0 %v472, 96
    %v476 = vpop.permute.xlu0 %475
    %v478 = vmul.f32 %v473, %v476
    %v479 = vmul.f32 %v461, %v393
    %v480 = vadd.f32 %v478, %v479
    %482 = vrot.lane.b32.xlu0 %v480, 96
    %v483 = vpop.permute.xlu0 %482
    %v484 = vsel %vm133, %v483, 0
    %486 = vmatpush.msra.mxu0 0.0
    %487 = vmatpush.msra.mxu0 0.0
    %488 = vmatpush.msra.mxu0 0.0
    %489 = vmatpush.msra.mxu0 0.0
    %490 = vmatpush.msra.mxu0 0.0
    %491 = vmatpush.msra.mxu0 0.0
    %492 = vmatpush.msra.mxu0 0.0
    %493 = vmatpush.msra.mxu0 0.0
    %494 = vmatpush.msra.mxu0 0.0
    %495 = vmatpush.msra.mxu0 0.0
    %496 = vmatpush.msra.mxu0 0.0
    %497 = vmatpush.msra.mxu0 0.0
    %498 = vmatpush.msra.mxu0 %v128
    %499 = vmatpush.msra.mxu0 %v127
    %500 = vmatpush.msra.mxu0 %v126
    %501 = vmatpush.msra.mxu0 %v125
    %502 = vmatmul.f32.gmra.mxu0 %v484
    %v503 = vpop.f32.mrf.mxu0
    %v504 = vadd.f32 0.0, %v503
    %505 = vdwg.mxu0
    %v507 = vsel %vm157, %v116, 0
    %509 = vmatpush.msra.mxu0 0.0
    %510 = vmatpush.msra.mxu0 0.0
    %511 = vmatpush.msra.mxu0 0.0
    %512 = vmatpush.msra.mxu0 0.0
    %513 = vmatpush.msra.mxu0 0.0
    %514 = vmatpush.msra.mxu0 0.0
    %515 = vmatpush.msra.mxu0 0.0
    %516 = vmatpush.msra.mxu0 0.0
    %517 = vmatpush.msra.mxu0 0.0
    %518 = vmatpush.msra.mxu0 0.0
    %519 = vmatpush.msra.mxu0 0.0
    %520 = vmatpush.msra.mxu0 0.0
    %521 = vmatpush.msra.mxu0 0.0
    %522 = vmatpush.msra.mxu0 0.0
    %523 = vmatpush.msra.mxu0 %v124
    %524 = vmatpush.msra.mxu0 %v123
    %525 = vmatmul.f32.gmra.mxu0 %v507
    %v526 = vpop.f32.mrf.mxu0
    %v527 = vadd.f32 %v504, %v526
    %528 = vdwg.mxu0
    %v529 = vadd.f32 %v527, %v131
    %v530 = vxor.u32 %v529, 2147483648
    %v531 = vmul.f32 %v530, 1.442695
    %v532 = vpow.pop %v531
    %v533 = vadd.f32 %v532, 1.0
    %v534 = vrcp.pop %v533
    %v535 = vmul.f32 %v533, %v534
    %v536 = vsub.f32 1.0, %v535
    %v537 = vmul.f32 %v534, %v536
    %v538 = vadd.f32 %v534, %v537
    %vm539 = vweird.f32 %v533
    %vm540 = vweird.f32 %v534
    %vm541 = vmor %vm539, %vm540
    %v542 = vsel %vm541, %v534, %v538
    %v543 = vand.u32 2147483647, %v533
    %vm544 = vcmp.eq.f32.partialorder %v543, 8.507059e+37
    %v545 = vand.u32 %v533, 2147483648
    %v546 = vor.u32 1.1754944e-38, %v545
    %v547 = vsel %vm544, %v546, %v542
    %v548 = vmul.f32 1.0, %v547
    %550 = vrot.lane.b32.xlu0 %v529, 32
    %v551 = vpop.permute.xlu0 %550
    %v553 = vmul.f32 %v548, %v551
    %555 = vrot.lane.b32.xlu0 %v553, 64
    %v556 = vpop.permute.xlu0 %555
    %v558 = vadd.f32 %v529, %v556
    %v559 = vtanh.pop %v558
    %v560 = vsub.f32 1.0, %v548
    %562 = vrot.lane.b32.xlu0 %v559, 96
    %v563 = vpop.permute.xlu0 %562
    %v565 = vmul.f32 %v560, %v563
    %v566 = vmul.f32 %v548, %v480
    %v567 = vadd.f32 %v565, %v566
    %569 = vrot.lane.b32.xlu0 %v567, 96
    %v570 = vpop.permute.xlu0 %569
    %v571 = vsel %vm133, %v570, 0
    %573 = vmatpush.msra.mxu0 0.0
    %574 = vmatpush.msra.mxu0 0.0
    %575 = vmatpush.msra.mxu0 0.0
    %576 = vmatpush.msra.mxu0 0.0
    %577 = vmatpush.msra.mxu0 0.0
    %578 = vmatpush.msra.mxu0 0.0
    %579 = vmatpush.msra.mxu0 0.0
    %580 = vmatpush.msra.mxu0 0.0
    %581 = vmatpush.msra.mxu0 0.0
    %582 = vmatpush.msra.mxu0 0.0
    %583 = vmatpush.msra.mxu0 0.0
    %584 = vmatpush.msra.mxu0 0.0
    %585 = vmatpush.msra.mxu0 %v128
    %586 = vmatpush.msra.mxu0 %v127
    %587 = vmatpush.msra.mxu0 %v126
    %588 = vmatpush.msra.mxu0 %v125
    %589 = vmatmul.f32.gmra.mxu0 %v571
    %v590 = vpop.f32.mrf.mxu0
    %v591 = vadd.f32 0.0, %v590
    %592 = vdwg.mxu0
    %v594 = vsel %vm157, %v118, 0
    %596 = vmatpush.msra.mxu0 0.0
    %597 = vmatpush.msra.mxu0 0.0
    %598 = vmatpush.msra.mxu0 0.0
    %599 = vmatpush.msra.mxu0 0.0
    %600 = vmatpush.msra.mxu0 0.0
    %601 = vmatpush.msra.mxu0 0.0
    %602 = vmatpush.msra.mxu0 0.0
    %603 = vmatpush.msra.mxu0 0.0
    %604 = vmatpush.msra.mxu0 0.0
    %605 = vmatpush.msra.mxu0 0.0
    %606 = vmatpush.msra.mxu0 0.0
    %607 = vmatpush.msra.mxu0 0.0
    %608 = vmatpush.msra.mxu0 0.0
    %609 = vmatpush.msra.mxu0 0.0
    %610 = vmatpush.msra.mxu0 %v124
    %611 = vmatpush.msra.mxu0 %v123
    %612 = vmatmul.f32.gmra.mxu0 %v594
    %v613 = vpop.f32.mrf.mxu0
    %v614 = vadd.f32 %v591, %v613
    %615 = vdwg.mxu0
    %v616 = vadd.f32 %v614, %v131
    %v617 = vxor.u32 %v616, 2147483648
    %v618 = vmul.f32 %v617, 1.442695
    %v619 = vpow.pop %v618
    %v620 = vadd.f32 %v619, 1.0
    %v621 = vrcp.pop %v620
    %v622 = vmul.f32 %v620, %v621
    %v623 = vsub.f32 1.0, %v622
    %v624 = vmul.f32 %v621, %v623
    %v625 = vadd.f32 %v621, %v624
    %vm626 = vweird.f32 %v620
    %vm627 = vweird.f32 %v621
    %vm628 = vmor %vm626, %vm627
    %v629 = vsel %vm628, %v621, %v625
    %v630 = vand.u32 2147483647, %v620
    %vm631 = vcmp.eq.f32.partialorder %v630, 8.507059e+37
    %v632 = vand.u32 %v620, 2147483648
    %v633 = vor.u32 1.1754944e-38, %v632
    %v634 = vsel %vm631, %v633, %v629
    %v635 = vmul.f32 1.0, %v634
    %637 = vrot.lane.b32.xlu0 %v616, 32
    %v638 = vpop.permute.xlu0 %637
    %v640 = vmul.f32 %v635, %v638
    %642 = vrot.lane.b32.xlu0 %v640, 64
    %v643 = vpop.permute.xlu0 %642
    %v645 = vadd.f32 %v616, %v643
    %v646 = vtanh.pop %v645
    %v647 = vsub.f32 1.0, %v635
    %649 = vrot.lane.b32.xlu0 %v646, 96
    %v650 = vpop.permute.xlu0 %649
    %v652 = vmul.f32 %v647, %v650
    %v653 = vmul.f32 %v635, %v567
    %v654 = vadd.f32 %v652, %v653
    %656 = vrot.lane.b32.xlu0 %v654, 96
    %v657 = vpop.permute.xlu0 %656
    %v658 = vsel %vm133, %v657, 0
    %660 = vmatpush.msra.mxu0 0.0
    %661 = vmatpush.msra.mxu0 0.0
    %662 = vmatpush.msra.mxu0 0.0
    %663 = vmatpush.msra.mxu0 0.0
    %664 = vmatpush.msra.mxu0 0.0
    %665 = vmatpush.msra.mxu0 0.0
    %666 = vmatpush.msra.mxu0 0.0
    %667 = vmatpush.msra.mxu0 0.0
    %668 = vmatpush.msra.mxu0 0.0
    %669 = vmatpush.msra.mxu0 0.0
    %670 = vmatpush.msra.mxu0 0.0
    %671 = vmatpush.msra.mxu0 0.0
    %672 = vmatpush.msra.mxu0 %v128
    %673 = vmatpush.msra.mxu0 %v127
    %674 = vmatpush.msra.mxu0 %v126
    %675 = vmatpush.msra.mxu0 %v125
    %676 = vmatmul.f32.gmra.mxu0 %v658
    %v677 = vpop.f32.mrf.mxu0
    %v678 = vadd.f32 0.0, %v677
    %679 = vdwg.mxu0
    %v681 = vsel %vm157, %v120, 0
    %683 = vmatpush.msra.mxu0 0.0
    %684 = vmatpush.msra.mxu0 0.0
    %685 = vmatpush.msra.mxu0 0.0
    %686 = vmatpush.msra.mxu0 0.0
    %687 = vmatpush.msra.mxu0 0.0
    %688 = vmatpush.msra.mxu0 0.0
    %689 = vmatpush.msra.mxu0 0.0
    %690 = vmatpush.msra.mxu0 0.0
    %691 = vmatpush.msra.mxu0 0.0
    %692 = vmatpush.msra.mxu0 0.0
    %693 = vmatpush.msra.mxu0 0.0
    %694 = vmatpush.msra.mxu0 0.0
    %695 = vmatpush.msra.mxu0 0.0
    %696 = vmatpush.msra.mxu0 0.0
    %697 = vmatpush.msra.mxu0 %v124
    %698 = vmatpush.msra.mxu0 %v123
    %699 = vmatmul.f32.gmra.mxu0 %v681
    %v700 = vpop.f32.mrf.mxu0
    %v701 = vadd.f32 %v678, %v700
    %702 = vdwg.mxu0
    %v703 = vadd.f32 %v701, %v131
    %v704 = vxor.u32 %v703, 2147483648
    %v705 = vmul.f32 %v704, 1.442695
    %v706 = vpow.pop %v705
    %v707 = vadd.f32 %v706, 1.0
    %v708 = vrcp.pop %v707
    %v709 = vmul.f32 %v707, %v708
    %v710 = vsub.f32 1.0, %v709
    %v711 = vmul.f32 %v708, %v710
    %v712 = vadd.f32 %v708, %v711
    %vm713 = vweird.f32 %v707
    %vm714 = vweird.f32 %v708
    %vm715 = vmor %vm713, %vm714
    %v716 = vsel %vm715, %v708, %v712
    %v717 = vand.u32 2147483647, %v707
    %vm718 = vcmp.eq.f32.partialorder %v717, 8.507059e+37
    %v719 = vand.u32 %v707, 2147483648
    %v720 = vor.u32 1.1754944e-38, %v719
    %v721 = vsel %vm718, %v720, %v716
    %v722 = vmul.f32 1.0, %v721
    %724 = vrot.lane.b32.xlu0 %v703, 32
    %v725 = vpop.permute.xlu0 %724
    %v727 = vmul.f32 %v722, %v725
    %729 = vrot.lane.b32.xlu0 %v727, 64
    %v730 = vpop.permute.xlu0 %729
    %v732 = vadd.f32 %v703, %v730
    %v733 = vtanh.pop %v732
    %v734 = vsub.f32 1.0, %v722
    %736 = vrot.lane.b32.xlu0 %v733, 96
    %v737 = vpop.permute.xlu0 %736
    %v739 = vmul.f32 %v734, %v737
    %v740 = vmul.f32 %v722, %v654
    %v741 = vadd.f32 %v739, %v740
    %743 = vrot.lane.b32.xlu0 %v741, 96
    %v744 = vpop.permute.xlu0 %743
    %v745 = vsel %vm133, %v744, 0
    %747 = vmatpush.msra.mxu0 0.0
    %748 = vmatpush.msra.mxu0 0.0
    %749 = vmatpush.msra.mxu0 0.0
    %750 = vmatpush.msra.mxu0 0.0
    %751 = vmatpush.msra.mxu0 0.0
    %752 = vmatpush.msra.mxu0 0.0
    %753 = vmatpush.msra.mxu0 0.0
    %754 = vmatpush.msra.mxu0 0.0
    %755 = vmatpush.msra.mxu0 0.0
    %756 = vmatpush.msra.mxu0 0.0
    %757 = vmatpush.msra.mxu0 0.0
    %758 = vmatpush.msra.mxu0 0.0
    %759 = vmatpush.msra.mxu0 %v128
    %760 = vmatpush.msra.mxu0 %v127
    %761 = vmatpush.msra.mxu0 %v126
    %762 = vmatpush.msra.mxu0 %v125
    %763 = vmatmul.f32.gmra.mxu0 %v745
    %v764 = vpop.f32.mrf.mxu0
    %v765 = vadd.f32 0.0, %v764
    %766 = vdwg.mxu0
    %v768 = vsel %vm157, %v122, 0
    %770 = vmatpush.msra.mxu0 0.0
    %771 = vmatpush.msra.mxu0 0.0
    %772 = vmatpush.msra.mxu0 0.0
    %773 = vmatpush.msra.mxu0 0.0
    %774 = vmatpush.msra.mxu0 0.0
    %775 = vmatpush.msra.mxu0 0.0
    %776 = vmatpush.msra.mxu0 0.0
    %777 = vmatpush.msra.mxu0 0.0
    %778 = vmatpush.msra.mxu0 0.0
    %779 = vmatpush.msra.mxu0 0.0
    %780 = vmatpush.msra.mxu0 0.0
    %781 = vmatpush.msra.mxu0 0.0
    %782 = vmatpush.msra.mxu0 0.0
    %783 = vmatpush.msra.mxu0 0.0
    %784 = vmatpush.msra.mxu0 %v124
    %785 = vmatpush.msra.mxu0 %v123
    %786 = vmatmul.f32.gmra.mxu0 %v768
    %v787 = vpop.f32.mrf.mxu0
    %v788 = vadd.f32 %v765, %v787
    %789 = vdwg.mxu0
    %v790 = vadd.f32 %v788, %v131
    %v791 = vxor.u32 %v790, 2147483648
    %v792 = vmul.f32 %v791, 1.442695
    %v793 = vpow.pop %v792
    %v794 = vadd.f32 %v793, 1.0
    %v795 = vrcp.pop %v794
    %v796 = vmul.f32 %v794, %v795
    %v797 = vsub.f32 1.0, %v796
    %v798 = vmul.f32 %v795, %v797
    %v799 = vadd.f32 %v795, %v798
    %vm800 = vweird.f32 %v794
    %vm801 = vweird.f32 %v795
    %vm802 = vmor %vm800, %vm801
    %v803 = vsel %vm802, %v795, %v799
    %v804 = vand.u32 2147483647, %v794
    %vm805 = vcmp.eq.f32.partialorder %v804, 8.507059e+37
    %v806 = vand.u32 %v794, 2147483648
    %v807 = vor.u32 1.1754944e-38, %v806
    %v808 = vsel %vm805, %v807, %v803
    %v809 = vmul.f32 1.0, %v808
    %811 = vrot.lane.b32.xlu0 %v790, 32
    %v812 = vpop.permute.xlu0 %811
    %v814 = vmul.f32 %v809, %v812
    %816 = vrot.lane.b32.xlu0 %v814, 64
    %v817 = vpop.permute.xlu0 %816
    %v819 = vadd.f32 %v790, %v817
    %v820 = vtanh.pop %v819
    %v821 = vsub.f32 1.0, %v809
    %823 = vrot.lane.b32.xlu0 %v820, 96
    %v824 = vpop.permute.xlu0 %823
    %v826 = vmul.f32 %v821, %v824
    %v827 = vmul.f32 %v809, %v741
    %v828 = vadd.f32 %v826, %v827
    %830 = vrot.lane.b32.xlu0 %v828, 96
    %v831 = vpop.permute.xlu0 %830
    %vm833 = vcmask 254976
    %834 = vst.msk [vmem:[#allocation12] sm:$0x3] %vm833, %v831
    %v835 = vld [vmem:[#allocation8] sm:$0xff]
    %v836 = vld [vmem:[#allocation8 + $0x8] sm:$0xff]
    %v837 = vld [vmem:[#allocation8 + $0x10] sm:$0xff]
    %v838 = vld [vmem:[#allocation8 + $0x18] sm:$0xff]
    %v839 = vld [vmem:[#allocation10] sm:$0xff]
    %v840 = vld [vmem:[#allocation10 + $0x8] sm:$0xff]
    %v841 = vld [vmem:[#allocation10 + $0x10] sm:$0xff]
    %v842 = vld [vmem:[#allocation10 + $0x18] sm:$0xff]
    %v843 = vld [vmem:[%s6] sm:$0x1]
    %v845 = vperm.slane %v843, 0
    %847 = vmatpush.msra.mxu0 0.0
    %848 = vmatpush.msra.mxu0 0.0
    %849 = vmatpush.msra.mxu0 0.0
    %850 = vmatpush.msra.mxu0 0.0
    %851 = vmatpush.msra.mxu0 0.0
    %852 = vmatpush.msra.mxu0 0.0
    %853 = vmatpush.msra.mxu0 0.0
    %854 = vmatpush.msra.mxu0 0.0
    %855 = vmatpush.msra.mxu0 0.0
    %856 = vmatpush.msra.mxu0 0.0
    %857 = vmatpush.msra.mxu0 0.0
    %858 = vmatpush.msra.mxu0 0.0
    %859 = vmatpush.msra.mxu0 %v842
    %860 = vmatpush.msra.mxu0 %v841
    %861 = vmatpush.msra.mxu0 %v840
    %862 = vmatpush.msra.mxu0 %v839
    %863 = vmatmul.f32.gmra.mxu0 %v135
    %v864 = vpop.f32.mrf.mxu0
    %v865 = vadd.f32 0.0, %v864
    %866 = vdwg.mxu0
    %867 = vmatpush.msra.mxu0 0.0
    %868 = vmatpush.msra.mxu0 0.0
    %869 = vmatpush.msra.mxu0 0.0
    %870 = vmatpush.msra.mxu0 0.0
    %871 = vmatpush.msra.mxu0 0.0
    %872 = vmatpush.msra.mxu0 0.0
    %873 = vmatpush.msra.mxu0 0.0
    %874 = vmatpush.msra.mxu0 0.0
    %875 = vmatpush.msra.mxu0 0.0
    %876 = vmatpush.msra.mxu0 0.0
    %877 = vmatpush.msra.mxu0 0.0
    %878 = vmatpush.msra.mxu0 0.0
    %879 = vmatpush.msra.mxu0 %v838
    %880 = vmatpush.msra.mxu0 %v837
    %881 = vmatpush.msra.mxu0 %v836
    %882 = vmatpush.msra.mxu0 %v835
    %883 = vmatmul.f32.gmra.mxu0 %v223
    %v884 = vpop.f32.mrf.mxu0
    %v885 = vadd.f32 %v865, %v884
    %886 = vdwg.mxu0
    %v887 = vadd.f32 %v885, %v845
    %v888 = vxor.u32 %v887, 2147483648
    %v889 = vmul.f32 %v888, 1.442695
    %v890 = vpow.pop %v889
    %v891 = vadd.f32 %v890, 1.0
    %v892 = vrcp.pop %v891
    %v893 = vmul.f32 %v891, %v892
    %v894 = vsub.f32 1.0, %v893
    %v895 = vmul.f32 %v892, %v894
    %v896 = vadd.f32 %v892, %v895
    %vm897 = vweird.f32 %v891
    %vm898 = vweird.f32 %v892
    %vm899 = vmor %vm897, %vm898
    %v900 = vsel %vm899, %v892, %v896
    %v901 = vand.u32 2147483647, %v891
    %vm902 = vcmp.eq.f32.partialorder %v901, 8.507059e+37
    %v903 = vand.u32 %v891, 2147483648
    %v904 = vor.u32 1.1754944e-38, %v903
    %v905 = vsel %vm902, %v904, %v900
    %v906 = vmul.f32 1.0, %v905
    %908 = vrot.lane.b32.xlu0 %v887, 32
    %v909 = vpop.permute.xlu0 %908
    %v911 = vmul.f32 %v906, %v909
    %913 = vrot.lane.b32.xlu0 %v911, 64
    %v914 = vpop.permute.xlu0 %913
    %v916 = vadd.f32 %v887, %v914
    %v917 = vtanh.pop %v916
    %v918 = vsub.f32 1.0, %v906
    %920 = vrot.lane.b32.xlu0 %v917, 96
    %v921 = vpop.permute.xlu0 %920
    %v923 = vmul.f32 %v918, %v921
    %v924 = vmul.f32 %v906, 0.0
    %v925 = vadd.f32 %v923, %v924
    %927 = vrot.lane.b32.xlu0 %v925, 96
    %v928 = vpop.permute.xlu0 %927
    %v929 = vsel %vm133, %v928, 0
    %931 = vmatpush.msra.mxu0 0.0
    %932 = vmatpush.msra.mxu0 0.0
    %933 = vmatpush.msra.mxu0 0.0
    %934 = vmatpush.msra.mxu0 0.0
    %935 = vmatpush.msra.mxu0 0.0
    %936 = vmatpush.msra.mxu0 0.0
    %937 = vmatpush.msra.mxu0 0.0
    %938 = vmatpush.msra.mxu0 0.0
    %939 = vmatpush.msra.mxu0 0.0
    %940 = vmatpush.msra.mxu0 0.0
    %941 = vmatpush.msra.mxu0 0.0
    %942 = vmatpush.msra.mxu0 0.0
    %943 = vmatpush.msra.mxu0 %v842
    %944 = vmatpush.msra.mxu0 %v841
    %945 = vmatpush.msra.mxu0 %v840
    %946 = vmatpush.msra.mxu0 %v839
    %947 = vmatmul.f32.gmra.mxu0 %v929
    %v948 = vpop.f32.mrf.mxu0
    %v949 = vadd.f32 0.0, %v948
    %950 = vdwg.mxu0
    %951 = vmatpush.msra.mxu0 0.0
    %952 = vmatpush.msra.mxu0 0.0
    %953 = vmatpush.msra.mxu0 0.0
    %954 = vmatpush.msra.mxu0 0.0
    %955 = vmatpush.msra.mxu0 0.0
    %956 = vmatpush.msra.mxu0 0.0
    %957 = vmatpush.msra.mxu0 0.0
    %958 = vmatpush.msra.mxu0 0.0
    %959 = vmatpush.msra.mxu0 0.0
    %960 = vmatpush.msra.mxu0 0.0
    %961 = vmatpush.msra.mxu0 0.0
    %962 = vmatpush.msra.mxu0 0.0
    %963 = vmatpush.msra.mxu0 %v838
    %964 = vmatpush.msra.mxu0 %v837
    %965 = vmatpush.msra.mxu0 %v836
    %966 = vmatpush.msra.mxu0 %v835
    %967 = vmatmul.f32.gmra.mxu0 %v310
    %v968 = vpop.f32.mrf.mxu0
    %v969 = vadd.f32 %v949, %v968
    %970 = vdwg.mxu0
    %v971 = vadd.f32 %v969, %v845
    %v972 = vxor.u32 %v971, 2147483648
    %v973 = vmul.f32 %v972, 1.442695
    %v974 = vpow.pop %v973
    %v975 = vadd.f32 %v974, 1.0
    %v976 = vrcp.pop %v975
    %v977 = vmul.f32 %v975, %v976
    %v978 = vsub.f32 1.0, %v977
    %v979 = vmul.f32 %v976, %v978
    %v980 = vadd.f32 %v976, %v979
    %vm981 = vweird.f32 %v975
    %vm982 = vweird.f32 %v976
    %vm983 = vmor %vm981, %vm982
    %v984 = vsel %vm983, %v976, %v980
    %v985 = vand.u32 2147483647, %v975
    %vm986 = vcmp.eq.f32.partialorder %v985, 8.507059e+37
    %v987 = vand.u32 %v975, 2147483648
    %v988 = vor.u32 1.1754944e-38, %v987
    %v989 = vsel %vm986, %v988, %v984
    %v990 = vmul.f32 1.0, %v989
    %992 = vrot.lane.b32.xlu0 %v971, 32
    %v993 = vpop.permute.xlu0 %992
    %v995 = vmul.f32 %v990, %v993
    %997 = vrot.lane.b32.xlu0 %v995, 64
    %v998 = vpop.permute.xlu0 %997
    %v1000 = vadd.f32 %v971, %v998
    %v1001 = vtanh.pop %v1000
    %v1002 = vsub.f32 1.0, %v990
    %1004 = vrot.lane.b32.xlu0 %v1001, 96
    %v1005 = vpop.permute.xlu0 %1004
    %v1007 = vmul.f32 %v1002, %v1005
    %v1008 = vmul.f32 %v990, %v925
    %v1009 = vadd.f32 %v1007, %v1008
    %1011 = vrot.lane.b32.xlu0 %v1009, 96
    %v1012 = vpop.permute.xlu0 %1011
    %v1013 = vsel %vm133, %v1012, 0
    %1015 = vmatpush.msra.mxu0 0.0
    %1016 = vmatpush.msra.mxu0 0.0
    %1017 = vmatpush.msra.mxu0 0.0
    %1018 = vmatpush.msra.mxu0 0.0
    %1019 = vmatpush.msra.mxu0 0.0
    %1020 = vmatpush.msra.mxu0 0.0
    %1021 = vmatpush.msra.mxu0 0.0
    %1022 = vmatpush.msra.mxu0 0.0
    %1023 = vmatpush.msra.mxu0 0.0
    %1024 = vmatpush.msra.mxu0 0.0
    %1025 = vmatpush.msra.mxu0 0.0
    %1026 = vmatpush.msra.mxu0 0.0
    %1027 = vmatpush.msra.mxu0 %v842
    %1028 = vmatpush.msra.mxu0 %v841
    %1029 = vmatpush.msra.mxu0 %v840
    %1030 = vmatpush.msra.mxu0 %v839
    %1031 = vmatmul.f32.gmra.mxu0 %v1013
    %v1032 = vpop.f32.mrf.mxu0
    %v1033 = vadd.f32 0.0, %v1032
    %1034 = vdwg.mxu0
    %1035 = vmatpush.msra.mxu0 0.0
    %1036 = vmatpush.msra.mxu0 0.0
    %1037 = vmatpush.msra.mxu0 0.0
    %1038 = vmatpush.msra.mxu0 0.0
    %1039 = vmatpush.msra.mxu0 0.0
    %1040 = vmatpush.msra.mxu0 0.0
    %1041 = vmatpush.msra.mxu0 0.0
    %1042 = vmatpush.msra.mxu0 0.0
    %1043 = vmatpush.msra.mxu0 0.0
    %1044 = vmatpush.msra.mxu0 0.0
    %1045 = vmatpush.msra.mxu0 0.0
    %1046 = vmatpush.msra.mxu0 0.0
    %1047 = vmatpush.msra.mxu0 %v838
    %1048 = vmatpush.msra.mxu0 %v837
    %1049 = vmatpush.msra.mxu0 %v836
    %1050 = vmatpush.msra.mxu0 %v835
    %1051 = vmatmul.f32.gmra.mxu0 %v397
    %v1052 = vpop.f32.mrf.mxu0
    %v1053 = vadd.f32 %v1033, %v1052
    %1054 = vdwg.mxu0
    %v1055 = vadd.f32 %v1053, %v845
    %v1056 = vxor.u32 %v1055, 2147483648
    %v1057 = vmul.f32 %v1056, 1.442695
    %v1058 = vpow.pop %v1057
    %v1059 = vadd.f32 %v1058, 1.0
    %v1060 = vrcp.pop %v1059
    %v1061 = vmul.f32 %v1059, %v1060
    %v1062 = vsub.f32 1.0, %v1061
    %v1063 = vmul.f32 %v1060, %v1062
    %v1064 = vadd.f32 %v1060, %v1063
    %vm1065 = vweird.f32 %v1059
    %vm1066 = vweird.f32 %v1060
    %vm1067 = vmor %vm1065, %vm1066
    %v1068 = vsel %vm1067, %v1060, %v1064
    %v1069 = vand.u32 2147483647, %v1059
    %vm1070 = vcmp.eq.f32.partialorder %v1069, 8.507059e+37
    %v1071 = vand.u32 %v1059, 2147483648
    %v1072 = vor.u32 1.1754944e-38, %v1071
    %v1073 = vsel %vm1070, %v1072, %v1068
    %v1074 = vmul.f32 1.0, %v1073
    %1076 = vrot.lane.b32.xlu0 %v1055, 32
    %v1077 = vpop.permute.xlu0 %1076
    %v1079 = vmul.f32 %v1074, %v1077
    %1081 = vrot.lane.b32.xlu0 %v1079, 64
    %v1082 = vpop.permute.xlu0 %1081
    %v1084 = vadd.f32 %v1055, %v1082
    %v1085 = vtanh.pop %v1084
    %v1086 = vsub.f32 1.0, %v1074
    %1088 = vrot.lane.b32.xlu0 %v1085, 96
    %v1089 = vpop.permute.xlu0 %1088
    %v1091 = vmul.f32 %v1086, %v1089
    %v1092 = vmul.f32 %v1074, %v1009
    %v1093 = vadd.f32 %v1091, %v1092
    %1095 = vrot.lane.b32.xlu0 %v1093, 96
    %v1096 = vpop.permute.xlu0 %1095
    %v1097 = vsel %vm133, %v1096, 0
    %1099 = vmatpush.msra.mxu0 0.0
    %1100 = vmatpush.msra.mxu0 0.0
    %1101 = vmatpush.msra.mxu0 0.0
    %1102 = vmatpush.msra.mxu0 0.0
    %1103 = vmatpush.msra.mxu0 0.0
    %1104 = vmatpush.msra.mxu0 0.0
    %1105 = vmatpush.msra.mxu0 0.0
    %1106 = vmatpush.msra.mxu0 0.0
    %1107 = vmatpush.msra.mxu0 0.0
    %1108 = vmatpush.msra.mxu0 0.0
    %1109 = vmatpush.msra.mxu0 0.0
    %1110 = vmatpush.msra.mxu0 0.0
    %1111 = vmatpush.msra.mxu0 %v842
    %1112 = vmatpush.msra.mxu0 %v841
    %1113 = vmatpush.msra.mxu0 %v840
    %1114 = vmatpush.msra.mxu0 %v839
    %1115 = vmatmul.f32.gmra.mxu0 %v1097
    %v1116 = vpop.f32.mrf.mxu0
    %v1117 = vadd.f32 0.0, %v1116
    %1118 = vdwg.mxu0
    %1119 = vmatpush.msra.mxu0 0.0
    %1120 = vmatpush.msra.mxu0 0.0
    %1121 = vmatpush.msra.mxu0 0.0
    %1122 = vmatpush.msra.mxu0 0.0
    %1123 = vmatpush.msra.mxu0 0.0
    %1124 = vmatpush.msra.mxu0 0.0
    %1125 = vmatpush.msra.mxu0 0.0
    %1126 = vmatpush.msra.mxu0 0.0
    %1127 = vmatpush.msra.mxu0 0.0
    %1128 = vmatpush.msra.mxu0 0.0
    %1129 = vmatpush.msra.mxu0 0.0
    %1130 = vmatpush.msra.mxu0 0.0
    %1131 = vmatpush.msra.mxu0 %v838
    %1132 = vmatpush.msra.mxu0 %v837
    %1133 = vmatpush.msra.mxu0 %v836
    %1134 = vmatpush.msra.mxu0 %v835
    %1135 = vmatmul.f32.gmra.mxu0 %v484
    %v1136 = vpop.f32.mrf.mxu0
    %v1137 = vadd.f32 %v1117, %v1136
    %1138 = vdwg.mxu0
    %v1139 = vadd.f32 %v1137, %v845
    %v1140 = vxor.u32 %v1139, 2147483648
    %v1141 = vmul.f32 %v1140, 1.442695
    %v1142 = vpow.pop %v1141
    %v1143 = vadd.f32 %v1142, 1.0
    %v1144 = vrcp.pop %v1143
    %v1145 = vmul.f32 %v1143, %v1144
    %v1146 = vsub.f32 1.0, %v1145
    %v1147 = vmul.f32 %v1144, %v1146
    %v1148 = vadd.f32 %v1144, %v1147
    %vm1149 = vweird.f32 %v1143
    %vm1150 = vweird.f32 %v1144
    %vm1151 = vmor %vm1149, %vm1150
    %v1152 = vsel %vm1151, %v1144, %v1148
    %v1153 = vand.u32 2147483647, %v1143
    %vm1154 = vcmp.eq.f32.partialorder %v1153, 8.507059e+37
    %v1155 = vand.u32 %v1143, 2147483648
    %v1156 = vor.u32 1.1754944e-38, %v1155
    %v1157 = vsel %vm1154, %v1156, %v1152
    %v1158 = vmul.f32 1.0, %v1157
    %1160 = vrot.lane.b32.xlu0 %v1139, 32
    %v1161 = vpop.permute.xlu0 %1160
    %v1163 = vmul.f32 %v1158, %v1161
    %1165 = vrot.lane.b32.xlu0 %v1163, 64
    %v1166 = vpop.permute.xlu0 %1165
    %v1168 = vadd.f32 %v1139, %v1166
    %v1169 = vtanh.pop %v1168
    %v1170 = vsub.f32 1.0, %v1158
    %1172 = vrot.lane.b32.xlu0 %v1169, 96
    %v1173 = vpop.permute.xlu0 %1172
    %v1175 = vmul.f32 %v1170, %v1173
    %v1176 = vmul.f32 %v1158, %v1093
    %v1177 = vadd.f32 %v1175, %v1176
    %1179 = vrot.lane.b32.xlu0 %v1177, 96
    %v1180 = vpop.permute.xlu0 %1179
    %v1181 = vsel %vm133, %v1180, 0
    %1183 = vmatpush.msra.mxu0 0.0
    %1184 = vmatpush.msra.mxu0 0.0
    %1185 = vmatpush.msra.mxu0 0.0
    %1186 = vmatpush.msra.mxu0 0.0
    %1187 = vmatpush.msra.mxu0 0.0
    %1188 = vmatpush.msra.mxu0 0.0
    %1189 = vmatpush.msra.mxu0 0.0
    %1190 = vmatpush.msra.mxu0 0.0
    %1191 = vmatpush.msra.mxu0 0.0
    %1192 = vmatpush.msra.mxu0 0.0
    %1193 = vmatpush.msra.mxu0 0.0
    %1194 = vmatpush.msra.mxu0 0.0
    %1195 = vmatpush.msra.mxu0 %v842
    %1196 = vmatpush.msra.mxu0 %v841
    %1197 = vmatpush.msra.mxu0 %v840
    %1198 = vmatpush.msra.mxu0 %v839
    %1199 = vmatmul.f32.gmra.mxu0 %v1181
    %v1200 = vpop.f32.mrf.mxu0
    %v1201 = vadd.f32 0.0, %v1200
    %1202 = vdwg.mxu0
    %1203 = vmatpush.msra.mxu0 0.0
    %1204 = vmatpush.msra.mxu0 0.0
    %1205 = vmatpush.msra.mxu0 0.0
    %1206 = vmatpush.msra.mxu0 0.0
    %1207 = vmatpush.msra.mxu0 0.0
    %1208 = vmatpush.msra.mxu0 0.0
    %1209 = vmatpush.msra.mxu0 0.0
    %1210 = vmatpush.msra.mxu0 0.0
    %1211 = vmatpush.msra.mxu0 0.0
    %1212 = vmatpush.msra.mxu0 0.0
    %1213 = vmatpush.msra.mxu0 0.0
    %1214 = vmatpush.msra.mxu0 0.0
    %1215 = vmatpush.msra.mxu0 %v838
    %1216 = vmatpush.msra.mxu0 %v837
    %1217 = vmatpush.msra.mxu0 %v836
    %1218 = vmatpush.msra.mxu0 %v835
    %1219 = vmatmul.f32.gmra.mxu0 %v571
    %v1220 = vpop.f32.mrf.mxu0
    %v1221 = vadd.f32 %v1201, %v1220
    %1222 = vdwg.mxu0
    %v1223 = vadd.f32 %v1221, %v845
    %v1224 = vxor.u32 %v1223, 2147483648
    %v1225 = vmul.f32 %v1224, 1.442695
    %v1226 = vpow.pop %v1225
    %v1227 = vadd.f32 %v1226, 1.0
    %v1228 = vrcp.pop %v1227
    %v1229 = vmul.f32 %v1227, %v1228
    %v1230 = vsub.f32 1.0, %v1229
    %v1231 = vmul.f32 %v1228, %v1230
    %v1232 = vadd.f32 %v1228, %v1231
    %vm1233 = vweird.f32 %v1227
    %vm1234 = vweird.f32 %v1228
    %vm1235 = vmor %vm1233, %vm1234
    %v1236 = vsel %vm1235, %v1228, %v1232
    %v1237 = vand.u32 2147483647, %v1227
    %vm1238 = vcmp.eq.f32.partialorder %v1237, 8.507059e+37
    %v1239 = vand.u32 %v1227, 2147483648
    %v1240 = vor.u32 1.1754944e-38, %v1239
    %v1241 = vsel %vm1238, %v1240, %v1236
    %v1242 = vmul.f32 1.0, %v1241
    %1244 = vrot.lane.b32.xlu0 %v1223, 32
    %v1245 = vpop.permute.xlu0 %1244
    %v1247 = vmul.f32 %v1242, %v1245
    %1249 = vrot.lane.b32.xlu0 %v1247, 64
    %v1250 = vpop.permute.xlu0 %1249
    %v1252 = vadd.f32 %v1223, %v1250
    %v1253 = vtanh.pop %v1252
    %v1254 = vsub.f32 1.0, %v1242
    %1256 = vrot.lane.b32.xlu0 %v1253, 96
    %v1257 = vpop.permute.xlu0 %1256
    %v1259 = vmul.f32 %v1254, %v1257
    %v1260 = vmul.f32 %v1242, %v1177
    %v1261 = vadd.f32 %v1259, %v1260
    %1263 = vrot.lane.b32.xlu0 %v1261, 96
    %v1264 = vpop.permute.xlu0 %1263
    %v1265 = vsel %vm133, %v1264, 0
    %1267 = vmatpush.msra.mxu0 0.0
    %1268 = vmatpush.msra.mxu0 0.0
    %1269 = vmatpush.msra.mxu0 0.0
    %1270 = vmatpush.msra.mxu0 0.0
    %1271 = vmatpush.msra.mxu0 0.0
    %1272 = vmatpush.msra.mxu0 0.0
    %1273 = vmatpush.msra.mxu0 0.0
    %1274 = vmatpush.msra.mxu0 0.0
    %1275 = vmatpush.msra.mxu0 0.0
    %1276 = vmatpush.msra.mxu0 0.0
    %1277 = vmatpush.msra.mxu0 0.0
    %1278 = vmatpush.msra.mxu0 0.0
    %1279 = vmatpush.msra.mxu0 %v842
    %1280 = vmatpush.msra.mxu0 %v841
    %1281 = vmatpush.msra.mxu0 %v840
    %1282 = vmatpush.msra.mxu0 %v839
    %1283 = vmatmul.f32.gmra.mxu0 %v1265
    %v1284 = vpop.f32.mrf.mxu0
    %v1285 = vadd.f32 0.0, %v1284
    %1286 = vdwg.mxu0
    %1287 = vmatpush.msra.mxu0 0.0
    %1288 = vmatpush.msra.mxu0 0.0
    %1289 = vmatpush.msra.mxu0 0.0
    %1290 = vmatpush.msra.mxu0 0.0
    %1291 = vmatpush.msra.mxu0 0.0
    %1292 = vmatpush.msra.mxu0 0.0
    %1293 = vmatpush.msra.mxu0 0.0
    %1294 = vmatpush.msra.mxu0 0.0
    %1295 = vmatpush.msra.mxu0 0.0
    %1296 = vmatpush.msra.mxu0 0.0
    %1297 = vmatpush.msra.mxu0 0.0
    %1298 = vmatpush.msra.mxu0 0.0
    %1299 = vmatpush.msra.mxu0 %v838
    %1300 = vmatpush.msra.mxu0 %v837
    %1301 = vmatpush.msra.mxu0 %v836
    %1302 = vmatpush.msra.mxu0 %v835
    %1303 = vmatmul.f32.gmra.mxu0 %v658
    %v1304 = vpop.f32.mrf.mxu0
    %v1305 = vadd.f32 %v1285, %v1304
    %1306 = vdwg.mxu0
    %v1307 = vadd.f32 %v1305, %v845
    %v1308 = vxor.u32 %v1307, 2147483648
    %v1309 = vmul.f32 %v1308, 1.442695
    %v1310 = vpow.pop %v1309
    %v1311 = vadd.f32 %v1310, 1.0
    %v1312 = vrcp.pop %v1311
    %v1313 = vmul.f32 %v1311, %v1312
    %v1314 = vsub.f32 1.0, %v1313
    %v1315 = vmul.f32 %v1312, %v1314
    %v1316 = vadd.f32 %v1312, %v1315
    %vm1317 = vweird.f32 %v1311
    %vm1318 = vweird.f32 %v1312
    %vm1319 = vmor %vm1317, %vm1318
    %v1320 = vsel %vm1319, %v1312, %v1316
    %v1321 = vand.u32 2147483647, %v1311
    %vm1322 = vcmp.eq.f32.partialorder %v1321, 8.507059e+37
    %v1323 = vand.u32 %v1311, 2147483648
    %v1324 = vor.u32 1.1754944e-38, %v1323
    %v1325 = vsel %vm1322, %v1324, %v1320
    %v1326 = vmul.f32 1.0, %v1325
    %1328 = vrot.lane.b32.xlu0 %v1307, 32
    %v1329 = vpop.permute.xlu0 %1328
    %v1331 = vmul.f32 %v1326, %v1329
    %1333 = vrot.lane.b32.xlu0 %v1331, 64
    %v1334 = vpop.permute.xlu0 %1333
    %v1336 = vadd.f32 %v1307, %v1334
    %v1337 = vtanh.pop %v1336
    %v1338 = vsub.f32 1.0, %v1326
    %1340 = vrot.lane.b32.xlu0 %v1337, 96
    %v1341 = vpop.permute.xlu0 %1340
    %v1343 = vmul.f32 %v1338, %v1341
    %v1344 = vmul.f32 %v1326, %v1261
    %v1345 = vadd.f32 %v1343, %v1344
    %1347 = vrot.lane.b32.xlu0 %v1345, 96
    %v1348 = vpop.permute.xlu0 %1347
    %v1349 = vsel %vm133, %v1348, 0
    %1351 = vmatpush.msra.mxu0 0.0
    %1352 = vmatpush.msra.mxu0 0.0
    %1353 = vmatpush.msra.mxu0 0.0
    %1354 = vmatpush.msra.mxu0 0.0
    %1355 = vmatpush.msra.mxu0 0.0
    %1356 = vmatpush.msra.mxu0 0.0
    %1357 = vmatpush.msra.mxu0 0.0
    %1358 = vmatpush.msra.mxu0 0.0
    %1359 = vmatpush.msra.mxu0 0.0
    %1360 = vmatpush.msra.mxu0 0.0
    %1361 = vmatpush.msra.mxu0 0.0
    %1362 = vmatpush.msra.mxu0 0.0
    %1363 = vmatpush.msra.mxu0 %v842
    %1364 = vmatpush.msra.mxu0 %v841
    %1365 = vmatpush.msra.mxu0 %v840
    %1366 = vmatpush.msra.mxu0 %v839
    %1367 = vmatmul.f32.gmra.mxu0 %v1349
    %v1368 = vpop.f32.mrf.mxu0
    %v1369 = vadd.f32 0.0, %v1368
    %1370 = vdwg.mxu0
    %1371 = vmatpush.msra.mxu0 0.0
    %1372 = vmatpush.msra.mxu0 0.0
    %1373 = vmatpush.msra.mxu0 0.0
    %1374 = vmatpush.msra.mxu0 0.0
    %1375 = vmatpush.msra.mxu0 0.0
    %1376 = vmatpush.msra.mxu0 0.0
    %1377 = vmatpush.msra.mxu0 0.0
    %1378 = vmatpush.msra.mxu0 0.0
    %1379 = vmatpush.msra.mxu0 0.0
    %1380 = vmatpush.msra.mxu0 0.0
    %1381 = vmatpush.msra.mxu0 0.0
    %1382 = vmatpush.msra.mxu0 0.0
    %1383 = vmatpush.msra.mxu0 %v838
    %1384 = vmatpush.msra.mxu0 %v837
    %1385 = vmatpush.msra.mxu0 %v836
    %1386 = vmatpush.msra.mxu0 %v835
    %1387 = vmatmul.f32.gmra.mxu0 %v745
    %v1388 = vpop.f32.mrf.mxu0
    %v1389 = vadd.f32 %v1369, %v1388
    %1390 = vdwg.mxu0
    %v1391 = vadd.f32 %v1389, %v845
    %v1392 = vxor.u32 %v1391, 2147483648
    %v1393 = vmul.f32 %v1392, 1.442695
    %v1394 = vpow.pop %v1393
    %v1395 = vadd.f32 %v1394, 1.0
    %v1396 = vrcp.pop %v1395
    %v1397 = vmul.f32 %v1395, %v1396
    %v1398 = vsub.f32 1.0, %v1397
    %v1399 = vmul.f32 %v1396, %v1398
    %v1400 = vadd.f32 %v1396, %v1399
    %vm1401 = vweird.f32 %v1395
    %vm1402 = vweird.f32 %v1396
    %vm1403 = vmor %vm1401, %vm1402
    %v1404 = vsel %vm1403, %v1396, %v1400
    %v1405 = vand.u32 2147483647, %v1395
    %vm1406 = vcmp.eq.f32.partialorder %v1405, 8.507059e+37
    %v1407 = vand.u32 %v1395, 2147483648
    %v1408 = vor.u32 1.1754944e-38, %v1407
    %v1409 = vsel %vm1406, %v1408, %v1404
    %v1410 = vmul.f32 1.0, %v1409
    %1412 = vrot.lane.b32.xlu0 %v1391, 32
    %v1413 = vpop.permute.xlu0 %1412
    %v1415 = vmul.f32 %v1410, %v1413
    %1417 = vrot.lane.b32.xlu0 %v1415, 64
    %v1418 = vpop.permute.xlu0 %1417
    %v1420 = vadd.f32 %v1391, %v1418
    %v1421 = vtanh.pop %v1420
    %v1422 = vsub.f32 1.0, %v1410
    %1424 = vrot.lane.b32.xlu0 %v1421, 96
    %v1425 = vpop.permute.xlu0 %1424
    %v1427 = vmul.f32 %v1422, %v1425
    %v1428 = vmul.f32 %v1410, %v1345
    %v1429 = vadd.f32 %v1427, %v1428
    %1431 = vrot.lane.b32.xlu0 %v1429, 96
    %v1432 = vpop.permute.xlu0 %1431
    %v1433 = vsel %vm133, %v1432, 0
    %1435 = vmatpush.msra.mxu0 0.0
    %1436 = vmatpush.msra.mxu0 0.0
    %1437 = vmatpush.msra.mxu0 0.0
    %1438 = vmatpush.msra.mxu0 0.0
    %1439 = vmatpush.msra.mxu0 0.0
    %1440 = vmatpush.msra.mxu0 0.0
    %1441 = vmatpush.msra.mxu0 0.0
    %1442 = vmatpush.msra.mxu0 0.0
    %1443 = vmatpush.msra.mxu0 0.0
    %1444 = vmatpush.msra.mxu0 0.0
    %1445 = vmatpush.msra.mxu0 0.0
    %1446 = vmatpush.msra.mxu0 0.0
    %1447 = vmatpush.msra.mxu0 %v842
    %1448 = vmatpush.msra.mxu0 %v841
    %1449 = vmatpush.msra.mxu0 %v840
    %1450 = vmatpush.msra.mxu0 %v839
    %1451 = vmatmul.f32.gmra.mxu0 %v1433
    %v1452 = vpop.f32.mrf.mxu0
    %v1453 = vadd.f32 0.0, %v1452
    %1454 = vdwg.mxu0
    %v1455 = vsel %vm133, %v831, 0
    %1457 = vmatpush.msra.mxu0 0.0
    %1458 = vmatpush.msra.mxu0 0.0
    %1459 = vmatpush.msra.mxu0 0.0
    %1460 = vmatpush.msra.mxu0 0.0
    %1461 = vmatpush.msra.mxu0 0.0
    %1462 = vmatpush.msra.mxu0 0.0
    %1463 = vmatpush.msra.mxu0 0.0
    %1464 = vmatpush.msra.mxu0 0.0
    %1465 = vmatpush.msra.mxu0 0.0
    %1466 = vmatpush.msra.mxu0 0.0
    %1467 = vmatpush.msra.mxu0 0.0
    %1468 = vmatpush.msra.mxu0 0.0
    %1469 = vmatpush.msra.mxu0 %v838
    %1470 = vmatpush.msra.mxu0 %v837
    %1471 = vmatpush.msra.mxu0 %v836
    %1472 = vmatpush.msra.mxu0 %v835
    %1473 = vmatmul.f32.gmra.mxu0 %v1455
    %v1474 = vpop.f32.mrf.mxu0
    %v1475 = vadd.f32 %v1453, %v1474
    %1476 = vdwg.mxu0
    %v1477 = vadd.f32 %v1475, %v845
    %v1478 = vxor.u32 %v1477, 2147483648
    %v1479 = vmul.f32 %v1478, 1.442695
    %v1480 = vpow.pop %v1479
    %v1481 = vadd.f32 %v1480, 1.0
    %v1482 = vrcp.pop %v1481
    %v1483 = vmul.f32 %v1481, %v1482
    %v1484 = vsub.f32 1.0, %v1483
    %v1485 = vmul.f32 %v1482, %v1484
    %v1486 = vadd.f32 %v1482, %v1485
    %vm1487 = vweird.f32 %v1481
    %vm1488 = vweird.f32 %v1482
    %vm1489 = vmor %vm1487, %vm1488
    %v1490 = vsel %vm1489, %v1482, %v1486
    %v1491 = vand.u32 2147483647, %v1481
    %vm1492 = vcmp.eq.f32.partialorder %v1491, 8.507059e+37
    %v1493 = vand.u32 %v1481, 2147483648
    %v1494 = vor.u32 1.1754944e-38, %v1493
    %v1495 = vsel %vm1492, %v1494, %v1490
    %v1496 = vmul.f32 1.0, %v1495
    %1498 = vrot.lane.b32.xlu0 %v1477, 32
    %v1499 = vpop.permute.xlu0 %1498
    %v1501 = vmul.f32 %v1496, %v1499
    %1503 = vrot.lane.b32.xlu0 %v1501, 64
    %v1504 = vpop.permute.xlu0 %1503
    %v1506 = vadd.f32 %v1477, %v1504
    %v1507 = vtanh.pop %v1506
    %v1508 = vsub.f32 1.0, %v1496
    %1510 = vrot.lane.b32.xlu0 %v1507, 96
    %v1511 = vpop.permute.xlu0 %1510
    %v1513 = vmul.f32 %v1508, %v1511
    %v1514 = vmul.f32 %v1496, %v1429
    %v1515 = vadd.f32 %v1513, %v1514
    %1517 = vrot.lane.b32.xlu0 %v1515, 96
    %v1518 = vpop.permute.xlu0 %1517
    %s1520 = scalar_lea.vmem [#allocation12], 2
    %1521 = vst.msk [vmem:[%s1520] sm:$0x3] %vm833, %v1518
    %1523 = vst.msk [vmem:[#allocation11] sm:$0x3] %vm833, %v928
    %s1525 = scalar_lea.vmem [#allocation11], 2
    %1526 = vst.msk [vmem:[%s1525] sm:$0x3] %vm833, %v1012
    %s1528 = scalar_lea.vmem [#allocation11], 4
    %1529 = vst.msk [vmem:[%s1528] sm:$0x3] %vm833, %v1096
    %s1531 = scalar_lea.vmem [#allocation11], 6
    %1532 = vst.msk [vmem:[%s1531] sm:$0x3] %vm833, %v1180
    %s1534 = scalar_lea.vmem [#allocation11], 8
    %1535 = vst.msk [vmem:[%s1534] sm:$0x3] %vm833, %v1264
    %s1537 = scalar_lea.vmem [#allocation11], 10
    %1538 = vst.msk [vmem:[%s1537] sm:$0x3] %vm833, %v1348
    %s1540 = scalar_lea.vmem [#allocation11], 12
    %1541 = vst.msk [vmem:[%s1540] sm:$0x3] %vm833, %v1432
    %s1542 = scalar_lea.vmem [#allocation11], 14
    %1543 = vst.msk [vmem:[%s1542] sm:$0x3] %vm833, %v1518
    // Predicated region
    $region50: #{tpu_custom_call.1} parent=1 // pred_check
      _
    $region51: #{tpu_custom_call.1} parent=1 // pred_check_branch
      %1545 = sbr.rel (0) target = $region53
    $region52: #{tpu_custom_call.1} parent=1 // pred_region
      %1547 = vsyncadd [#allocation4], 0
      %s1548 = sshll.u32 [#allocation11], 4
      %s1549 = int_to_ptr.vmem [resolvable:$true] %s1548
      %s1550 = sshll.u32 %s7, 4
      %s1551 = int_to_ptr.hbm [resolvable:$true] %s1550
      %1556 = dma.vmem_to_hbm [thread:$0]  %s1549, 256, %s1551, [#allocation4], 32, 32, 2
    $region53: #{tpu_custom_call.1} parent=1 // pred_fallthru
      _
    // Predicated region
    $region54: #{tpu_custom_call.1} parent=1 // pred_check
      _
    $region55: #{tpu_custom_call.1} parent=1 // pred_check_branch
      %1558 = sbr.rel (0) target = $region57
    $region56: #{tpu_custom_call.1} parent=1 // pred_region
      %1560 = vsyncadd [#allocation13], 0
      %s1561 = sshll.u32 [#allocation12], 4
      %s1562 = int_to_ptr.vmem [resolvable:$true] %s1561
      %s1563 = sshll.u32 %s8, 4
      %s1564 = int_to_ptr.hbm [resolvable:$true] %s1563
      %1569 = dma.vmem_to_hbm [thread:$0]  %s1562, 64, %s1564, [#allocation13], 32, 32, 2
    $region57: #{tpu_custom_call.1} parent=1 // pred_fallthru
      _
    // Predicated region
    $region58: #{tpu_custom_call.1} parent=1 // pred_check
      _
    $region59: #{tpu_custom_call.1} parent=1 // pred_check_branch
      %1571 = sbr.rel (0) target = $region61
    $region60: #{tpu_custom_call.1} parent=1 // pred_region
      %1573 = dma.done [#allocation4], 256
    $region61: #{tpu_custom_call.1} parent=1 // pred_fallthru
      _
    // Predicated region
    $region62: #{tpu_custom_call.1} parent=1 // pred_check
      _
    $region63: #{tpu_custom_call.1} parent=1 // pred_check_branch
      %1575 = sbr.rel (0) target = $region65
    $region64: #{tpu_custom_call.1} parent=1 // pred_region
      %1577 = dma.done [#allocation13], 64
    $region65: #{tpu_custom_call.1} parent=1 // pred_fallthru
      _
    %1578 = vsyncpa [#allocation3], 1
    %1579 = vsyncpa [#allocation6], 1
    %1580 = vsyncpa [#allocation9], 1
    %1581 = vsyncpa [#allocation4], 1
    %1582 = vsyncpa [#allocation13], 1

</llo_original>
